<compile_context>
chip_gen: v7x
topology: tpu7x:2x2x1
jax: 0.10.0
libtpu: 0.0.40
codegen_flags: <defaults>
</compile_context>

<pallas_src>
import functools

import jax
import jax.numpy as jnp
from jax.experimental import pallas as pl
from jax.experimental.pallas import tpu as pltpu

# ---- synthetic BERT config (small, deterministic) ---------------------------
VOCAB = 64
SEQ = 8
HIDDEN = 32
FFN = 64
NUM_LABELS = 2
TOPK = 3
BATCH = 2
LN_EPS = 1e-12
NEG_INF = -1e9

OUT_ROWS = 8      # padded output rows per example (row 0 is real)
OUT_LANES = 128   # lane-dense output width (>= NUM_LABELS)
LANES = 128


# ------------------------------ kernel helpers --------------------------------
def _layernorm(x, g, b):
    mu = jnp.mean(x, axis=-1, keepdims=True)
    var = jnp.mean((x - mu) ** 2, axis=-1, keepdims=True)
    return (x - mu) * jax.lax.rsqrt(var + LN_EPS) * g + b


def _gelu(x):
    # TODO(synk): HF BERT uses exact erf GELU; tanh approximation (EUP-friendly) stands in.
    return 0.5 * x * (1.0 + jnp.tanh(0.7978845608028654 * (x + 0.044715 * x * x * x)))


# ------------------------------ fused kernel ----------------------------------
def fused_kernel(emb_ref, bias_ref, wn_ref, wqkv_ref, wmisc_ref, wcls_ref, wb_ref,
                 out_ref, acc_rep_ref, acc_prob_ref, *, strategy, topk, num_labels):
    """One grid step = one (example b, doc t): embeddings-LN -> 1 encoder layer ->
    pooler -> per-strategy weighted accumulation; finalize at the last doc."""
    H, F = HIDDEN, FFN
    b = pl.program_id(0)          # parallel axis (megacore on v7x)
    t = pl.program_id(1)          # sequential doc-reduction axis

    @pl.when(t == 0)
    def _():
        acc_rep_ref[...] = jnp.zeros_like(acc_rep_ref)
        acc_prob_ref[...] = jnp.zeros_like(acc_prob_ref)

    # ---- bias / LN rows: one aligned [8, 128] f32 tile ----
    ln_e_g = wb_ref[1:2, 0:H];          ln_e_b = wb_ref[1:2, H:2 * H]
    ln1_g  = wb_ref[1:2, 2 * H:3 * H];  ln1_b  = wb_ref[1:2, 3 * H:4 * H]
    ln2_g  = wb_ref[2:3, 0:H];          ln2_b  = wb_ref[2:3, H:2 * H]
    b_o    = wb_ref[2:3, 2 * H:3 * H];  b_p    = wb_ref[2:3, 3 * H:4 * H]
    b_1    = wb_ref[3:4, 0:F];          b_2    = wb_ref[3:4, F:F + H]
    b_c    = wb_ref[4:5, :]

    # ---- embedding layernorm (per-doc [S, H] block, pipelined by BlockSpec) ----
    x = emb_ref[0, 0].astype(jnp.float32)                                   # [S, H]
    x = _layernorm(x, ln_e_g, ln_e_b)

    # ---- fused QKV projection (bf16 operands, f32 accumulation).
    #      Q / bq are pre-scaled by 1/sqrt(H) at pack time.
    qkv = jnp.dot(x.astype(jnp.bfloat16), wqkv_ref[...],
                  preferred_element_type=jnp.float32) + wb_ref[0:1, :]      # [S, 128]
    q = qkv[:, 0:H]
    k = qkv[:, H:2 * H]
    v = qkv[:, 2 * H:3 * H]

    # ---- per-doc self-attention with additive key-padding bias ----
    # TODO(synk): at real S (512) this would become a flash-style q-tile loop; at S=8
    # the whole [S, S] score tile fits in one vreg.
    scores = jax.lax.dot_general(q.astype(jnp.bfloat16), k.astype(jnp.bfloat16),
                                 (((1,), (1,)), ((), ())),
                                 preferred_element_type=jnp.float32)        # [S, S]
    scores = scores + bias_ref[0, 0]                                        # key mask
    scores = scores - jnp.max(scores, axis=-1, keepdims=True)
    p = jnp.exp(scores)
    p = p * pl.reciprocal(jnp.sum(p, axis=-1, keepdims=True), approx=True)
    ctx = jnp.dot(p.astype(jnp.bfloat16), v.astype(jnp.bfloat16),
                  preferred_element_type=jnp.float32)                       # [S, H]
    w_o = wmisc_ref[0:H, 0:H]
    attn = jnp.dot(ctx.astype(jnp.bfloat16), w_o,
                   preferred_element_type=jnp.float32) + b_o
    x = _layernorm(x + attn, ln1_g, ln1_b)

    # ---- feed-forward ----
    w_1 = wmisc_ref[0:H, 2 * H:4 * H]                                       # [H, F]
    h = jnp.dot(x.astype(jnp.bfloat16), w_1,
                preferred_element_type=jnp.float32) + b_1
    h = _gelu(h)
    w_2 = wmisc_ref[0:F, H:2 * H]                                           # [F, H]
    ffn = jnp.dot(h.astype(jnp.bfloat16), w_2,
                  preferred_element_type=jnp.float32) + b_2
    x = _layernorm(x + ffn, ln2_g, ln2_b)

    # ---- pooler: direct CLS-row slice (no gather-as-matmul) ----
    w_p = wmisc_ref[H:2 * H, 0:H]
    pooled = jnp.tanh(jnp.dot(x[0:1, :].astype(jnp.bfloat16), w_p,
                              preferred_element_type=jnp.float32) + b_p)    # [1, H]

    # normalized doc weight (computed exactly in the wrapper), scalar from SMEM
    w = wn_ref[b, t]

    if 'vote' in strategy:
        logits = jnp.dot(pooled.astype(jnp.bfloat16), wcls_ref[...],
                         preferred_element_type=jnp.float32) + b_c          # [1, 128]
        lane = jax.lax.broadcasted_iota(jnp.int32, (1, OUT_LANES), 1)
        logits = jnp.where(lane < num_labels, logits, NEG_INF)              # mask pads
        logits = logits - jnp.max(logits, axis=-1, keepdims=True)
        e = jnp.exp(logits)
        probs = e / jnp.sum(e, axis=-1, keepdims=True)                      # exact div
        acc_prob_ref[...] += w * probs
    else:  # 'average' / 'weightaverage'
        acc_rep_ref[...] += w * pooled

    @pl.when(t == topk - 1)
    def _():
        if 'vote' in strategy:
            lane = jax.lax.broadcasted_iota(jnp.int32, (1, OUT_LANES), 1)
            avg = jnp.where(lane < num_labels, acc_prob_ref[...], 1.0)
            row = jnp.log(avg)                       # padded lanes -> log(1) = 0
        else:
            row = jnp.dot(acc_rep_ref[...].astype(jnp.bfloat16), wcls_ref[...],
                          preferred_element_type=jnp.float32) + b_c
        rows = jax.lax.broadcasted_iota(jnp.int32, (OUT_ROWS, OUT_LANES), 0)
        out_ref[0] = jnp.where(rows == 0,
                               jnp.broadcast_to(row, (OUT_ROWS, OUT_LANES)),
                               0.0).astype(out_ref.dtype)


# ------------------------------ weight packing ---------------------------------
def pack_weights(p):
    """Pack the weights into lane-dense (128-wide) slabs; matmul slabs are bf16."""
    H, F = HIDDEN, FFN
    scale = 1.0 / (H ** 0.5)

    # [H, 128] : Q (pre-scaled) | K | V | zero-pad
    w_qkv = jnp.concatenate([p['wq'] * scale, p['wk'], p['wv']], axis=1)
    w_qkv = jnp.pad(w_qkv, ((0, 0), (0, LANES - 3 * H))).astype(jnp.bfloat16)

    # [F, 128] : lanes 0:32 = [Wo ; Wp], lanes 32:64 = W2, lanes 64:128 = W1 (row-padded)
    left = jnp.concatenate([p['wo'], p['wp']], axis=0)           # [2H, H]
    mid = p['w2']                                                # [F, H]
    right = jnp.pad(p['w1'], ((0, F - H), (0, 0)))               # [F, 2H]
    w_misc = jnp.concatenate([left, mid, right], axis=1).astype(jnp.bfloat16)

    # [H, 128] : classifier weight zero-padded to 128 labels (lane-dense logits)
    w_cls = jnp.pad(p['wc'], ((0, 0), (0, LANES - NUM_LABELS))).astype(jnp.bfloat16)

    # [8, 128] f32 bias/LN tile (single aligned VMEM tile)
    row0 = jnp.concatenate([p['bq'] * scale, p['bk'], p['bv'],
                            jnp.zeros((1, LANES - 3 * H), jnp.float32)], axis=1)
    row1 = jnp.concatenate([p['ln_e_g'], p['ln_e_b'], p['ln1_g'], p['ln1_b']], axis=1)
    row2 = jnp.concatenate([p['ln2_g'], p['ln2_b'], p['bo'], p['bp']], axis=1)
    row3 = jnp.concatenate([p['b1'], p['b2'],
                            jnp.zeros((1, LANES - F - H), jnp.float32)], axis=1)
    row4 = jnp.pad(p['bc'], ((0, 0), (0, LANES - NUM_LABELS)))
    w_bias = jnp.concatenate([row0, row1, row2, row3, row4,
                              jnp.zeros((3, LANES), jnp.float32)],
                             axis=0).astype(jnp.float32)
    return w_qkv, w_misc, w_cls, w_bias


# ------------------------------ wrapper ----------------------------------------
@functools.partial(jax.jit, static_argnames=('strategy',))
def lit_aug_predictor_crossenc(params, slabs, doc_ids, doc_mask, doc_weights, strategy):
    """Forward pass of LitAugPredictorCrossenc. Returns (None, logits_or_log_probs)."""
    T, B, S = doc_ids.shape

    # embedding lookup (gather) = plain JAX glue, per-doc blocks fed to the kernel
    emb = (params['word_emb'][doc_ids]
           + params['pos_emb'][None, None]
           + params['type_emb'][0])                                   # [T, B, S, H]
    emb = jnp.transpose(emb, (1, 0, 2, 3)).astype(jnp.float32)        # [B, T, S, H]

    # additive key-padding bias per doc: 0 for real tokens, -1e9 for padding
    attn_bias = ((jnp.transpose(doc_mask, (1, 0, 2)).astype(jnp.float32) - 1.0)
                 * 1e9).reshape(B, T, 1, S)

    # exact per-doc aggregation weights (matches reference normalization exactly)
    if strategy in ('average', 'softvote') or (strategy == 'weightvote' and T == 1):
        w_norm = jnp.full((B, T), 1.0 / T, jnp.float32)
    else:  # 'weightaverage' / 'weightvote' with T > 1
        wt = jnp.transpose(doc_weights, (1, 0)).astype(jnp.float32)   # [B, T]
        w_norm = wt / jnp.sum(wt, axis=1, keepdims=True)

    w_qkv, w_misc, w_cls, w_bias = slabs

    kernel = functools.partial(fused_kernel, strategy=strategy, topk=T,
                               num_labels=NUM_LABELS)
    out_pad = pl.pallas_call(
        kernel,
        out_shape=jax.ShapeDtypeStruct((B, OUT_ROWS, OUT_LANES), jnp.float32),
        grid_spec=pltpu.PrefetchScalarGridSpec(
            num_scalar_prefetch=0,
            grid=(B, T),                                   # batch parallel, docs reduced
            in_specs=[
                pl.BlockSpec((1, 1, S, HIDDEN), lambda b, t: (b, t, 0, 0)),   # emb
                pl.BlockSpec((1, 1, 1, S), lambda b, t: (b, t, 0, 0)),        # attn bias
                pl.BlockSpec(memory_space=pltpu.MemorySpace.SMEM),            # w_norm
                pl.BlockSpec((HIDDEN, LANES), lambda b, t: (0, 0)),           # w_qkv
                pl.BlockSpec((FFN, LANES), lambda b, t: (0, 0)),              # w_misc
                pl.BlockSpec((HIDDEN, LANES), lambda b, t: (0, 0)),           # w_cls
                pl.BlockSpec((8, LANES), lambda b, t: (0, 0)),                # w_bias
            ],
            out_specs=pl.BlockSpec((1, OUT_ROWS, OUT_LANES), lambda b, t: (b, 0, 0)),
            scratch_shapes=[pltpu.VMEM((1, HIDDEN), jnp.float32),     # rep accumulator
                            pltpu.VMEM((1, OUT_LANES), jnp.float32)], # prob accumulator
        ),
        compiler_params=pltpu.CompilerParams(
            dimension_semantics=("parallel", "arbitrary")),
    )(emb, attn_bias, w_norm, w_qkv, w_misc, w_cls, w_bias)

    return (None, out_pad[:, 0, :NUM_LABELS])


# ------------------------------ parameters ------------------------------------
def init_params(key):
    keys = jax.random.split(key, 12)

    def w(k, shape, scale=0.02):
        return scale * jax.random.normal(k, shape, jnp.float32)

    return dict(
        word_emb=w(keys[0], (VOCAB, HIDDEN)),
        pos_emb=w(keys[1], (SEQ, HIDDEN)),
        type_emb=w(keys[2], (2, HIDDEN)),
        ln_e_g=jnp.ones((1, HIDDEN), jnp.float32),
        ln_e_b=jnp.zeros((1, HIDDEN), jnp.float32),
        wq=w(keys[3], (HIDDEN, HIDDEN)), bq=jnp.zeros((1, HIDDEN), jnp.float32),
        wk=w(keys[4], (HIDDEN, HIDDEN)), bk=jnp.zeros((1, HIDDEN), jnp.float32),
        wv=w(keys[5], (HIDDEN, HIDDEN)), bv=jnp.zeros((1, HIDDEN), jnp.float32),
        wo=w(keys[6], (HIDDEN, HIDDEN)), bo=jnp.zeros((1, HIDDEN), jnp.float32),
        ln1_g=jnp.ones((1, HIDDEN), jnp.float32),
        ln1_b=jnp.zeros((1, HIDDEN), jnp.float32),
        w1=w(keys[7], (HIDDEN, FFN)), b1=jnp.zeros((1, FFN), jnp.float32),
        w2=w(keys[8], (FFN, HIDDEN)), b2=jnp.zeros((1, HIDDEN), jnp.float32),
        ln2_g=jnp.ones((1, HIDDEN), jnp.float32),
        ln2_b=jnp.zeros((1, HIDDEN), jnp.float32),
        wp=w(keys[9], (HIDDEN, HIDDEN)), bp=jnp.zeros((1, HIDDEN), jnp.float32),
        wc=w(keys[10], (HIDDEN, NUM_LABELS)), bc=jnp.zeros((1, NUM_LABELS), jnp.float32),
    )


# ------------------------------ main ------------------------------------------
if __name__ == "__main__":
    key = jax.random.PRNGKey(0)
    pkey, ikey, wkey = jax.random.split(key, 3)

    params = init_params(pkey)
    slabs = pack_weights(params)

    # topk pubmed doc batches: token ids, attention masks, per-example doc weights
    doc_ids = jax.random.randint(ikey, (TOPK, BATCH, SEQ), 0, VOCAB, dtype=jnp.int32)
    doc_mask = jnp.ones((TOPK, BATCH, SEQ), jnp.float32).at[:, :, SEQ - 2:].set(0.0)
    doc_weights = jax.random.uniform(wkey, (TOPK, BATCH), jnp.float32, 0.1, 1.0)

    results = {}
    for strategy in ("average", "weightaverage", "softvote", "weightvote"):
        _, out = lit_aug_predictor_crossenc(params, slabs, doc_ids, doc_mask,
                                            doc_weights, strategy)
        results[strategy] = jax.block_until_ready(out)

    print("KERNEL_OK")
</pallas_src>

<mosaic_0001>
module attributes {stable_mosaic.version = 11 : i64} {
  func.func @fused_kernel(%arg0: i32, %arg1: i32, %arg2: memref<1x1x8x32xf32, #tpu.memory_space<vmem>>, %arg3: memref<1x1x1x8xf32, #tpu.memory_space<vmem>>, %arg4: memref<2x3xf32, #tpu.memory_space<smem>>, %arg5: memref<32x128xbf16, #tpu.memory_space<vmem>>, %arg6: memref<64x128xbf16, #tpu.memory_space<vmem>>, %arg7: memref<32x128xbf16, #tpu.memory_space<vmem>>, %arg8: memref<8x128xf32, #tpu.memory_space<vmem>>, %arg9: memref<1x8x128xf32, #tpu.memory_space<vmem>>, %arg10: memref<1x32xf32, #tpu.memory_space<vmem>>, %arg11: memref<1x128xf32, #tpu.memory_space<vmem>>) attributes {dimension_semantics = [#tpu.dimension_semantics<parallel>, #tpu.dimension_semantics<arbitrary>], iteration_bounds = array<i64: 2, 3>, scalar_prefetch = 0 : i64, scratch_operands = 2 : i64, tpu.core_type = #tpu.core_type<tc>, window_params = [{transform_indices = @transform_0, window_bounds = array<i64: 1, 1, 8, 32>}, {transform_indices = @transform_1, window_bounds = array<i64: 1, 1, 1, 8>}, {transform_indices = @transform_2, window_bounds = array<i64: 2, 3>}, {pipeline_mode = #tpu.pipeline_mode<synchronous>, transform_indices = @transform_3, window_bounds = array<i64: 32, 128>}, {pipeline_mode = #tpu.pipeline_mode<synchronous>, transform_indices = @transform_4, window_bounds = array<i64: 64, 128>}, {pipeline_mode = #tpu.pipeline_mode<synchronous>, transform_indices = @transform_5, window_bounds = array<i64: 32, 128>}, {pipeline_mode = #tpu.pipeline_mode<synchronous>, transform_indices = @transform_6, window_bounds = array<i64: 8, 128>}, {transform_indices = @transform_7, window_bounds = array<i64: 1, 8, 128>}]} {
    %c0_i32 = arith.constant 0 : i32
    %0 = arith.cmpi eq, %arg1, %c0_i32 : i32
    %1 = arith.extui %0 : i1 to i32
    %c0_i32_0 = arith.constant 0 : i32
    %2 = arith.cmpi ne, %1, %c0_i32_0 : i32
    scf.if %2 {
      %cst_67 = arith.constant 0.000000e+00 : f32
      %158 = vector.broadcast %cst_67 : f32 to vector<1x32xf32>
      %c0_68 = arith.constant 0 : index
      %c0_69 = arith.constant 0 : index
      %159 = vector.load %arg10[%c0_68, %c0_69] : memref<1x32xf32, #tpu.memory_space<vmem>>, vector<1x32xf32>
      tpu.vector_store %arg10[%c0_68, %c0_69], %158 {strides = array<i32>} : memref<1x32xf32, #tpu.memory_space<vmem>>, vector<1x32xf32>,
      %cst_70 = arith.constant 0.000000e+00 : f32
      %160 = vector.broadcast %cst_70 : f32 to vector<1x128xf32>
      %c0_71 = arith.constant 0 : index
      %c0_72 = arith.constant 0 : index
      %161 = vector.load %arg11[%c0_71, %c0_72] : memref<1x128xf32, #tpu.memory_space<vmem>>, vector<1x128xf32>
      tpu.vector_store %arg11[%c0_71, %c0_72], %160 {strides = array<i32>} : memref<1x128xf32, #tpu.memory_space<vmem>>, vector<1x128xf32>,
    } else {
    }
    %c1 = arith.constant 1 : index
    %c0 = arith.constant 0 : index
    %3 = vector.load %arg8[%c1, %c0] : memref<8x128xf32, #tpu.memory_space<vmem>>, vector<1x32xf32>
    %c1_1 = arith.constant 1 : index
    %c32 = arith.constant 32 : index
    %4 = vector.load %arg8[%c1_1, %c32] : memref<8x128xf32, #tpu.memory_space<vmem>>, vector<1x32xf32>
    %c1_2 = arith.constant 1 : index
    %c64 = arith.constant 64 : index
    %5 = vector.load %arg8[%c1_2, %c64] : memref<8x128xf32, #tpu.memory_space<vmem>>, vector<1x32xf32>
    %c1_3 = arith.constant 1 : index
    %c96 = arith.constant 96 : index
    %6 = vector.load %arg8[%c1_3, %c96] : memref<8x128xf32, #tpu.memory_space<vmem>>, vector<1x32xf32>
    %c2 = arith.constant 2 : index
    %c0_4 = arith.constant 0 : index
    %7 = vector.load %arg8[%c2, %c0_4] : memref<8x128xf32, #tpu.memory_space<vmem>>, vector<1x32xf32>
    %c2_5 = arith.constant 2 : index
    %c32_6 = arith.constant 32 : index
    %8 = vector.load %arg8[%c2_5, %c32_6] : memref<8x128xf32, #tpu.memory_space<vmem>>, vector<1x32xf32>
    %c2_7 = arith.constant 2 : index
    %c64_8 = arith.constant 64 : index
    %9 = vector.load %arg8[%c2_7, %c64_8] : memref<8x128xf32, #tpu.memory_space<vmem>>, vector<1x32xf32>
    %c2_9 = arith.constant 2 : index
    %c96_10 = arith.constant 96 : index
    %10 = vector.load %arg8[%c2_9, %c96_10] : memref<8x128xf32, #tpu.memory_space<vmem>>, vector<1x32xf32>
    %c3 = arith.constant 3 : index
    %c0_11 = arith.constant 0 : index
    %11 = vector.load %arg8[%c3, %c0_11] : memref<8x128xf32, #tpu.memory_space<vmem>>, vector<1x64xf32>
    %c3_12 = arith.constant 3 : index
    %c64_13 = arith.constant 64 : index
    %12 = vector.load %arg8[%c3_12, %c64_13] : memref<8x128xf32, #tpu.memory_space<vmem>>, vector<1x32xf32>
    %c4 = arith.constant 4 : index
    %c0_14 = arith.constant 0 : index
    %13 = vector.load %arg8[%c4, %c0_14] : memref<8x128xf32, #tpu.memory_space<vmem>>, vector<1x128xf32>
    %c0_15 = arith.constant 0 : index
    %c0_16 = arith.constant 0 : index
    %c0_17 = arith.constant 0 : index
    %c0_18 = arith.constant 0 : index
    %14 = vector.load %arg2[%c0_15, %c0_16, %c0_17, %c0_18] : memref<1x1x8x32xf32, #tpu.memory_space<vmem>>, vector<1x1x8x32xf32>
    %15 = vector.shape_cast %14 : vector<1x1x8x32xf32> to vector<8x32xf32>
    %cst = arith.constant dense<0.000000e+00> : vector<8xf32>
    %16 = vector.multi_reduction <add>, %15, %cst [1] : vector<8x32xf32> to vector<8xf32>
    %17 = vector.shape_cast %16 : vector<8xf32> to vector<8x1xf32>
    %cst_19 = arith.constant 3.200000e+01 : f32
    %18 = vector.broadcast %cst_19 : f32 to vector<8x1xf32>
    %19 = arith.divf %17, %18 : vector<8x1xf32>
    %20 = vector.broadcast %19 : vector<8x1xf32> to vector<8x32xf32>
    %21 = arith.subf %15, %20 : vector<8x32xf32>
    %22 = arith.mulf %21, %21 : vector<8x32xf32>
    %cst_20 = arith.constant dense<0.000000e+00> : vector<8xf32>
    %23 = vector.multi_reduction <add>, %22, %cst_20 [1] : vector<8x32xf32> to vector<8xf32>
    %24 = vector.shape_cast %23 : vector<8xf32> to vector<8x1xf32>
    %cst_21 = arith.constant 3.200000e+01 : f32
    %25 = vector.broadcast %cst_21 : f32 to vector<8x1xf32>
    %26 = arith.divf %24, %25 : vector<8x1xf32>
    %27 = vector.broadcast %19 : vector<8x1xf32> to vector<8x32xf32>
    %28 = arith.subf %15, %27 : vector<8x32xf32>
    %cst_22 = arith.constant 9.99999996E-13 : f32
    %29 = vector.broadcast %cst_22 : f32 to vector<8x1xf32>
    %30 = arith.addf %26, %29 : vector<8x1xf32>
    %31 = math.rsqrt %30 : vector<8x1xf32>
    %32 = vector.broadcast %31 : vector<8x1xf32> to vector<8x32xf32>
    %33 = arith.mulf %28, %32 : vector<8x32xf32>
    %34 = vector.broadcast %3 : vector<1x32xf32> to vector<8x32xf32>
    %35 = arith.mulf %33, %34 : vector<8x32xf32>
    %36 = vector.broadcast %4 : vector<1x32xf32> to vector<8x32xf32>
    %37 = arith.addf %35, %36 : vector<8x32xf32>
    %38 = arith.truncf %37 : vector<8x32xf32> to vector<8x32xbf16>
    %c0_23 = arith.constant 0 : index
    %c0_24 = arith.constant 0 : index
    %39 = vector.load %arg5[%c0_23, %c0_24] : memref<32x128xbf16, #tpu.memory_space<vmem>>, vector<32x128xbf16>
    %cst_25 = arith.constant dense<0.000000e+00> : vector<8x128xf32>
    %40 = tpu.matmul %38, %39, %cst_25 {dimension_numbers = #tpu.dot_dimension_numbers<[1], [0], [0], [1], [0, 0, 1, 1], [], []>} : vector<8x32xbf16>, vector<32x128xbf16>, vector<8x128xf32> -> vector<8x128xf32>
    %c0_26 = arith.constant 0 : index
    %c0_27 = arith.constant 0 : index
    %41 = vector.load %arg8[%c0_26, %c0_27] : memref<8x128xf32, #tpu.memory_space<vmem>>, vector<1x128xf32>
    %42 = vector.broadcast %41 : vector<1x128xf32> to vector<8x128xf32>
    %43 = arith.addf %40, %42 : vector<8x128xf32>
    %44 = vector.extract_strided_slice %43 {offsets = [0, 0], sizes = [8, 32], strides = [1, 1]} : vector<8x128xf32> to vector<8x32xf32>
    %45 = vector.extract_strided_slice %43 {offsets = [0, 32], sizes = [8, 32], strides = [1, 1]} : vector<8x128xf32> to vector<8x32xf32>
    %46 = vector.extract_strided_slice %43 {offsets = [0, 64], sizes = [8, 32], strides = [1, 1]} : vector<8x128xf32> to vector<8x32xf32>
    %47 = arith.truncf %44 : vector<8x32xf32> to vector<8x32xbf16>
    %48 = arith.truncf %45 : vector<8x32xf32> to vector<8x32xbf16>
    %cst_28 = arith.constant dense<0.000000e+00> : vector<8x8xf32>
    %49 = tpu.matmul %47, %48, %cst_28 {dimension_numbers = #tpu.dot_dimension_numbers<[1], [1], [0], [0], [0, 0, 1, 0], [], []>} : vector<8x32xbf16>, vector<8x32xbf16>, vector<8x8xf32> -> vector<8x8xf32>
    %c0_29 = arith.constant 0 : index
    %c0_30 = arith.constant 0 : index
    %c0_31 = arith.constant 0 : index
    %c0_32 = arith.constant 0 : index
    %50 = vector.load %arg3[%c0_29, %c0_30, %c0_31, %c0_32] : memref<1x1x1x8xf32, #tpu.memory_space<vmem>>, vector<1x1x1x8xf32>
    %51 = vector.shape_cast %50 : vector<1x1x1x8xf32> to vector<1x8xf32>
    %52 = vector.broadcast %51 : vector<1x8xf32> to vector<8x8xf32>
    %53 = arith.addf %49, %52 : vector<8x8xf32>
    %cst_33 = arith.constant dense<0xFF800000> : vector<8xf32>
    %54 = vector.multi_reduction <maximumf>, %53, %cst_33 [1] : vector<8x8xf32> to vector<8xf32>
    %55 = vector.shape_cast %54 : vector<8xf32> to vector<8x1xf32>
    %56 = vector.broadcast %55 : vector<8x1xf32> to vector<8x8xf32>
    %57 = arith.subf %53, %56 : vector<8x8xf32>
    %58 = math.exp %57 : vector<8x8xf32>
    %cst_34 = arith.constant dense<0.000000e+00> : vector<8xf32>
    %59 = vector.multi_reduction <add>, %58, %cst_34 [1] : vector<8x8xf32> to vector<8xf32>
    %60 = vector.shape_cast %59 : vector<8xf32> to vector<8x1xf32>
    %61 = tpu.reciprocal %60 {approx = true} : vector<8x1xf32> -> vector<8x1xf32>
    %62 = vector.broadcast %61 : vector<8x1xf32> to vector<8x8xf32>
    %63 = arith.mulf %58, %62 : vector<8x8xf32>
    %64 = arith.truncf %63 : vector<8x8xf32> to vector<8x8xbf16>
    %65 = arith.truncf %46 : vector<8x32xf32> to vector<8x32xbf16>
    %cst_35 = arith.constant dense<0.000000e+00> : vector<8x32xf32>
    %66 = tpu.matmul %64, %65, %cst_35 {dimension_numbers = #tpu.dot_dimension_numbers<[1], [0], [0], [1], [0, 0, 1, 1], [], []>} : vector<8x8xbf16>, vector<8x32xbf16>, vector<8x32xf32> -> vector<8x32xf32>
    %c0_36 = arith.constant 0 : index
    %c0_37 = arith.constant 0 : index
    %67 = vector.load %arg6[%c0_36, %c0_37] : memref<64x128xbf16, #tpu.memory_space<vmem>>, vector<32x32xbf16>
    %68 = arith.truncf %66 : vector<8x32xf32> to vector<8x32xbf16>
    %cst_38 = arith.constant dense<0.000000e+00> : vector<8x32xf32>
    %69 = tpu.matmul %68, %67, %cst_38 {dimension_numbers = #tpu.dot_dimension_numbers<[1], [0], [0], [1], [0, 0, 1, 1], [], []>} : vector<8x32xbf16>, vector<32x32xbf16>, vector<8x32xf32> -> vector<8x32xf32>
    %70 = vector.broadcast %9 : vector<1x32xf32> to vector<8x32xf32>
    %71 = arith.addf %69, %70 : vector<8x32xf32>
    %72 = arith.addf %37, %71 : vector<8x32xf32>
    %cst_39 = arith.constant dense<0.000000e+00> : vector<8xf32>
    %73 = vector.multi_reduction <add>, %72, %cst_39 [1] : vector<8x32xf32> to vector<8xf32>
    %74 = vector.shape_cast %73 : vector<8xf32> to vector<8x1xf32>
    %cst_40 = arith.constant 3.200000e+01 : f32
    %75 = vector.broadcast %cst_40 : f32 to vector<8x1xf32>
    %76 = arith.divf %74, %75 : vector<8x1xf32>
    %77 = vector.broadcast %76 : vector<8x1xf32> to vector<8x32xf32>
    %78 = arith.subf %72, %77 : vector<8x32xf32>
    %79 = arith.mulf %78, %78 : vector<8x32xf32>
    %cst_41 = arith.constant dense<0.000000e+00> : vector<8xf32>
    %80 = vector.multi_reduction <add>, %79, %cst_41 [1] : vector<8x32xf32> to vector<8xf32>
    %81 = vector.shape_cast %80 : vector<8xf32> to vector<8x1xf32>
    %cst_42 = arith.constant 3.200000e+01 : f32
    %82 = vector.broadcast %cst_42 : f32 to vector<8x1xf32>
    %83 = arith.divf %81, %82 : vector<8x1xf32>
    %84 = vector.broadcast %76 : vector<8x1xf32> to vector<8x32xf32>
    %85 = arith.subf %72, %84 : vector<8x32xf32>
    %cst_43 = arith.constant 9.99999996E-13 : f32
    %86 = vector.broadcast %cst_43 : f32 to vector<8x1xf32>
    %87 = arith.addf %83, %86 : vector<8x1xf32>
    %88 = math.rsqrt %87 : vector<8x1xf32>
    %89 = vector.broadcast %88 : vector<8x1xf32> to vector<8x32xf32>
    %90 = arith.mulf %85, %89 : vector<8x32xf32>
    %91 = vector.broadcast %5 : vector<1x32xf32> to vector<8x32xf32>
    %92 = arith.mulf %90, %91 : vector<8x32xf32>
    %93 = vector.broadcast %6 : vector<1x32xf32> to vector<8x32xf32>
    %94 = arith.addf %92, %93 : vector<8x32xf32>
    %c0_44 = arith.constant 0 : index
    %c64_45 = arith.constant 64 : index
    %95 = vector.load %arg6[%c0_44, %c64_45] : memref<64x128xbf16, #tpu.memory_space<vmem>>, vector<32x64xbf16>
    %96 = arith.truncf %94 : vector<8x32xf32> to vector<8x32xbf16>
    %cst_46 = arith.constant dense<0.000000e+00> : vector<8x64xf32>
    %97 = tpu.matmul %96, %95, %cst_46 {dimension_numbers = #tpu.dot_dimension_numbers<[1], [0], [0], [1], [0, 0, 1, 1], [], []>} : vector<8x32xbf16>, vector<32x64xbf16>, vector<8x64xf32> -> vector<8x64xf32>
    %98 = vector.broadcast %11 : vector<1x64xf32> to vector<8x64xf32>
    %99 = arith.addf %97, %98 : vector<8x64xf32>
    %cst_47 = arith.constant 5.000000e-01 : f32
    %100 = vector.broadcast %cst_47 : f32 to vector<8x64xf32>
    %101 = arith.mulf %100, %99 : vector<8x64xf32>
    %cst_48 = arith.constant 4.471500e-02 : f32
    %102 = vector.broadcast %cst_48 : f32 to vector<8x64xf32>
    %103 = arith.mulf %102, %99 : vector<8x64xf32>
    %104 = arith.mulf %103, %99 : vector<8x64xf32>
    %105 = arith.mulf %104, %99 : vector<8x64xf32>
    %106 = arith.addf %99, %105 : vector<8x64xf32>
    %cst_49 = arith.constant 0.797884583 : f32
    %107 = vector.broadcast %cst_49 : f32 to vector<8x64xf32>
    %108 = arith.mulf %107, %106 : vector<8x64xf32>
    %109 = math.tanh %108 : vector<8x64xf32>
    %cst_50 = arith.constant 1.000000e+00 : f32
    %110 = vector.broadcast %cst_50 : f32 to vector<8x64xf32>
    %111 = arith.addf %110, %109 : vector<8x64xf32>
    %112 = arith.mulf %101, %111 : vector<8x64xf32>
    %c0_51 = arith.constant 0 : index
    %c32_52 = arith.constant 32 : index
    %113 = vector.load %arg6[%c0_51, %c32_52] : memref<64x128xbf16, #tpu.memory_space<vmem>>, vector<64x32xbf16>
    %114 = arith.truncf %112 : vector<8x64xf32> to vector<8x64xbf16>
    %cst_53 = arith.constant dense<0.000000e+00> : vector<8x32xf32>
    %115 = tpu.matmul %114, %113, %cst_53 {dimension_numbers = #tpu.dot_dimension_numbers<[1], [0], [0], [1], [0, 0, 1, 1], [], []>} : vector<8x64xbf16>, vector<64x32xbf16>, vector<8x32xf32> -> vector<8x32xf32>
    %116 = vector.broadcast %12 : vector<1x32xf32> to vector<8x32xf32>
    %117 = arith.addf %115, %116 : vector<8x32xf32>
    %118 = arith.addf %94, %117 : vector<8x32xf32>
    %cst_54 = arith.constant dense<0.000000e+00> : vector<8xf32>
    %119 = vector.multi_reduction <add>, %118, %cst_54 [1] : vector<8x32xf32> to vector<8xf32>
    %120 = vector.shape_cast %119 : vector<8xf32> to vector<8x1xf32>
    %cst_55 = arith.constant 3.200000e+01 : f32
    %121 = vector.broadcast %cst_55 : f32 to vector<8x1xf32>
    %122 = arith.divf %120, %121 : vector<8x1xf32>
    %123 = vector.broadcast %122 : vector<8x1xf32> to vector<8x32xf32>
    %124 = arith.subf %118, %123 : vector<8x32xf32>
    %125 = arith.mulf %124, %124 : vector<8x32xf32>
    %cst_56 = arith.constant dense<0.000000e+00> : vector<8xf32>
    %126 = vector.multi_reduction <add>, %125, %cst_56 [1] : vector<8x32xf32> to vector<8xf32>
    %127 = vector.shape_cast %126 : vector<8xf32> to vector<8x1xf32>
    %cst_57 = arith.constant 3.200000e+01 : f32
    %128 = vector.broadcast %cst_57 : f32 to vector<8x1xf32>
    %129 = arith.divf %127, %128 : vector<8x1xf32>
    %130 = vector.broadcast %122 : vector<8x1xf32> to vector<8x32xf32>
    %131 = arith.subf %118, %130 : vector<8x32xf32>
    %cst_58 = arith.constant 9.99999996E-13 : f32
    %132 = vector.broadcast %cst_58 : f32 to vector<8x1xf32>
    %133 = arith.addf %129, %132 : vector<8x1xf32>
    %134 = math.rsqrt %133 : vector<8x1xf32>
    %135 = vector.broadcast %134 : vector<8x1xf32> to vector<8x32xf32>
    %136 = arith.mulf %131, %135 : vector<8x32xf32>
    %137 = vector.broadcast %7 : vector<1x32xf32> to vector<8x32xf32>
    %138 = arith.mulf %136, %137 : vector<8x32xf32>
    %139 = vector.broadcast %8 : vector<1x32xf32> to vector<8x32xf32>
    %140 = arith.addf %138, %139 : vector<8x32xf32>
    %c32_59 = arith.constant 32 : index
    %c0_60 = arith.constant 0 : index
    %141 = vector.load %arg6[%c32_59, %c0_60] : memref<64x128xbf16, #tpu.memory_space<vmem>>, vector<32x32xbf16>
    %142 = vector.extract_strided_slice %140 {offsets = [0, 0], sizes = [1, 32], strides = [1, 1]} : vector<8x32xf32> to vector<1x32xf32>
    %143 = arith.truncf %142 : vector<1x32xf32> to vector<1x32xbf16>
    %cst_61 = arith.constant dense<0.000000e+00> : vector<1x32xf32>
    %144 = tpu.matmul %143, %141, %cst_61 {dimension_numbers = #tpu.dot_dimension_numbers<[1], [0], [0], [1], [0, 0, 1, 1], [], []>} : vector<1x32xbf16>, vector<32x32xbf16>, vector<1x32xf32> -> vector<1x32xf32>
    %145 = arith.addf %144, %10 : vector<1x32xf32>
    %146 = math.tanh %145 : vector<1x32xf32>
    %147 = arith.index_cast %arg0 : i32 to index
    %148 = arith.index_cast %arg1 : i32 to index
    %149 = memref.load %arg4[%147, %148] : memref<2x3xf32, #tpu.memory_space<smem>>
    %c0_62 = arith.constant 0 : index
    %c0_63 = arith.constant 0 : index
    %150 = vector.load %arg10[%c0_62, %c0_63] : memref<1x32xf32, #tpu.memory_space<vmem>>, vector<1x32xf32>
    %151 = vector.broadcast %149 : f32 to vector<1x32xf32>
    %152 = arith.mulf %151, %146 : vector<1x32xf32>
    %153 = arith.addf %150, %152 : vector<1x32xf32>
    %c0_64 = arith.constant 0 : index
    %c0_65 = arith.constant 0 : index
    %154 = vector.load %arg10[%c0_64, %c0_65] : memref<1x32xf32, #tpu.memory_space<vmem>>, vector<1x32xf32>
    tpu.vector_store %arg10[%c0_64, %c0_65], %153 {strides = array<i32>} : memref<1x32xf32, #tpu.memory_space<vmem>>, vector<1x32xf32>,
    %c2_i32 = arith.constant 2 : i32
    %155 = arith.cmpi eq, %arg1, %c2_i32 : i32
    %156 = arith.extui %155 : i1 to i32
    %c0_i32_66 = arith.constant 0 : i32
    %157 = arith.cmpi ne, %156, %c0_i32_66 : i32
    scf.if %157 {
      %c0_67 = arith.constant 0 : index
      %c0_68 = arith.constant 0 : index
      %158 = vector.load %arg10[%c0_67, %c0_68] : memref<1x32xf32, #tpu.memory_space<vmem>>, vector<1x32xf32>
      %159 = arith.truncf %158 : vector<1x32xf32> to vector<1x32xbf16>
      %c0_69 = arith.constant 0 : index
      %c0_70 = arith.constant 0 : index
      %160 = vector.load %arg7[%c0_69, %c0_70] : memref<32x128xbf16, #tpu.memory_space<vmem>>, vector<32x128xbf16>
      %cst_71 = arith.constant dense<0.000000e+00> : vector<1x128xf32>
      %161 = tpu.matmul %159, %160, %cst_71 {dimension_numbers = #tpu.dot_dimension_numbers<[1], [0], [0], [1], [0, 0, 1, 1], [], []>} : vector<1x32xbf16>, vector<32x128xbf16>, vector<1x128xf32> -> vector<1x128xf32>
      %162 = arith.addf %161, %13 : vector<1x128xf32>
      %163 = tpu.iota {dimensions = array<i32: 0>} : vector<8x128xi32>
      %c0_i32_72 = arith.constant 0 : i32
      %164 = vector.broadcast %c0_i32_72 : i32 to vector<8x128xi32>
      %165 = arith.cmpi eq, %163, %164 : vector<8x128xi32>
      %166 = vector.shape_cast %162 : vector<1x128xf32> to vector<1x128xf32>
      %167 = vector.broadcast %166 : vector<1x128xf32> to vector<8x128xf32>
      %cst_73 = arith.constant 0.000000e+00 : f32
      %168 = vector.broadcast %cst_73 : f32 to vector<8x128xf32>
      %169 = arith.select %165, %167, %168 : vector<8x128xi1>, vector<8x128xf32>
      %c0_74 = arith.constant 0 : index
      %c0_75 = arith.constant 0 : index
      %c0_76 = arith.constant 0 : index
      %170 = vector.load %arg9[%c0_74, %c0_75, %c0_76] : memref<1x8x128xf32, #tpu.memory_space<vmem>>, vector<1x8x128xf32>
      %171 = vector.shape_cast %170 : vector<1x8x128xf32> to vector<8x128xf32>
      %172 = vector.shape_cast %169 : vector<8x128xf32> to vector<1x8x128xf32>
      tpu.vector_store %arg9[%c0_74, %c0_75, %c0_76], %172 {strides = array<i32>} : memref<1x8x128xf32, #tpu.memory_space<vmem>>, vector<1x8x128xf32>,
    } else {
    }
    return
  }
  func.func @transform_0(%arg0: i32, %arg1: i32) -> (i32, i32, i32, i32) {
    %c0_i32 = arith.constant 0 : i32
    %c0_i32_0 = arith.constant 0 : i32
    %c0_i32_1 = arith.constant 0 : i32
    return %arg0, %arg1, %c0_i32, %c0_i32_0 : i32, i32, i32, i32
  }
  func.func @transform_1(%arg0: i32, %arg1: i32) -> (i32, i32, i32, i32) {
    %c0_i32 = arith.constant 0 : i32
    %c0_i32_0 = arith.constant 0 : i32
    %c0_i32_1 = arith.constant 0 : i32
    return %arg0, %arg1, %c0_i32, %c0_i32_0 : i32, i32, i32, i32
  }
  func.func @transform_2(%arg0: i32, %arg1: i32) -> (i32, i32) {
    %c0_i32 = arith.constant 0 : i32
    %c0_i32_0 = arith.constant 0 : i32
    %c0_i32_1 = arith.constant 0 : i32
    return %c0_i32, %c0_i32_0 : i32, i32
  }
  func.func @transform_3(%arg0: i32, %arg1: i32) -> (i32, i32) {
    %c0_i32 = arith.constant 0 : i32
    %c0_i32_0 = arith.constant 0 : i32
    %c0_i32_1 = arith.constant 0 : i32
    return %c0_i32, %c0_i32_0 : i32, i32
  }
  func.func @transform_4(%arg0: i32, %arg1: i32) -> (i32, i32) {
    %c0_i32 = arith.constant 0 : i32
    %c0_i32_0 = arith.constant 0 : i32
    %c0_i32_1 = arith.constant 0 : i32
    return %c0_i32, %c0_i32_0 : i32, i32
  }
  func.func @transform_5(%arg0: i32, %arg1: i32) -> (i32, i32) {
    %c0_i32 = arith.constant 0 : i32
    %c0_i32_0 = arith.constant 0 : i32
    %c0_i32_1 = arith.constant 0 : i32
    return %c0_i32, %c0_i32_0 : i32, i32
  }
  func.func @transform_6(%arg0: i32, %arg1: i32) -> (i32, i32) {
    %c0_i32 = arith.constant 0 : i32
    %c0_i32_0 = arith.constant 0 : i32
    %c0_i32_1 = arith.constant 0 : i32
    return %c0_i32, %c0_i32_0 : i32, i32
  }
  func.func @transform_7(%arg0: i32, %arg1: i32) -> (i32, i32, i32) {
    %c0_i32 = arith.constant 0 : i32
    %c0_i32_0 = arith.constant 0 : i32
    %c0_i32_1 = arith.constant 0 : i32
    return %arg0, %c0_i32, %c0_i32_0 : i32, i32, i32
  }
}

</mosaic_0001>

<llo_original>
// kernel: lit_aug_predictor_crossenc.1
$region0: #{lit_aug_predictor_crossenc.1}
  #allocation0 [shape = 'u32[]', space=smem, size = 0x4, offset = 0x4, fixed_abs, tag = 'smem constant byte address 0x4 - core index']
  #allocation1 [shape = 'u32[144,128]{1,0:T(1,128)}', space=vmem, size = 0x12000, scoped, tag = 'internal scratch']
  #allocation2 [shape = 'f32[1,32]{1,0:T(1,128)}', space=vmem, size = 0x200, scoped, tag = 'scratch operand']
  #allocation3 [shape = 'f32[1,128]{1,0:T(1,128)}', space=vmem, size = 0x200, scoped, tag = 'scratch operand']
  %s0 = inlined_call_operand.vmem [shape: f32[2,3,8,32], index: 0, kind: input, shape index: {}]
  %s1 = inlined_call_operand.vmem [shape: f32[2,3,1,8], index: 1, kind: input, shape index: {}]
  %s2 = inlined_call_operand.vmem [shape: f32[2,3], index: 2, kind: input, shape index: {}]
  %s3 = inlined_call_operand.vmem [shape: bf16[32,128], index: 3, kind: input, shape index: {}]
  %s4 = inlined_call_operand.vmem [shape: bf16[64,128], index: 4, kind: input, shape index: {}]
  %s5 = inlined_call_operand.vmem [shape: bf16[32,128], index: 5, kind: input, shape index: {}]
  %s6 = inlined_call_operand.vmem [shape: f32[8,128], index: 6, kind: input, shape index: {}]
  %s7 = inlined_call_operand.vmem [shape: f32[2,8,128], index: 7, kind: output, shape index: {}]
  %s8 = sld [smem:[#allocation0]]
  $region73: #{lit_aug_predictor_crossenc.1} parent=0
    _
  %s10 = ssub.s32 1, %s8
  %s11 = scalar_select 0, %s10, %s8
  $region1: #{lit_aug_predictor_crossenc.1} parent=0
    #allocation4 [shape = 'u8[1024]{0}', space=smem, size = 0x400, scoped, tag = 'input window, operand 2, single buffered']
    #allocation5 [shape = 's32[2]{0}', space=sflag, size = 0x8, scoped, tag = 'scoped memory for lit_aug_predictor_crossenc.1']
    %12 = vsyncpa [#allocation5], 0
    loop: start=0, step=1, limit=8
    $region2: #{lit_aug_predictor_crossenc.1} parent=1 // loop_pre_header
      _
    $region3: #{lit_aug_predictor_crossenc.1} parent=1 // loop_header
      %s14 = sphi 0, %s18
      %p15 = scmp.ge.s32.totalorder %s14, 8
      %s21 = sphi 0, %s33
      %s22 = sphi 0, %s29
      %s23 = sphi 0, %s21
      %s24 = sphi 0, %s22
      %s25 = sphi 0, %s23
      %s26 = sphi 0, %s24
      %s38 = sphi 0, %s40
      %s41 = sphi 0, %s38
      %s42 = sphi 0, %s41
      %s58 = sphi 0, %s42
      %s66 = sphi 0, %s68
      %s69 = sphi 0, %s66
      %s70 = sphi 0, %s69
      %s86 = sphi 0, %s70
      %s90 = sphi 0, %s90
      %s92 = sphi 0, %s90
      %s93 = sphi 0, %s92
      %s107 = sphi 0, %s93
      %s111 = sphi 0, %s111
      %s113 = sphi 0, %s111
      %s114 = sphi 0, %s113
      %s128 = sphi 0, %s114
      %s132 = sphi 0, %s132
      %s134 = sphi 0, %s132
      %s135 = sphi 0, %s134
      %s149 = sphi 0, %s135
      %s153 = sphi 0, %s153
      %s155 = sphi 0, %s153
      %s156 = sphi 0, %s155
      %s170 = sphi 0, %s156
      %s174 = sphi 0, %s174
      %s176 = sphi 0, %s174
      %s177 = sphi 0, %s176
      %s191 = sphi 0, %s177
      %s197 = sphi 0, %s199
      %s200 = sphi 0, %s197
      %s201 = sphi 0, %s200
      %s217 = sphi 0, %s201
    $region4: #{lit_aug_predictor_crossenc.1} parent=1 // loop_header_branch
      %17 = sbr.rel (%p15) target = $region8
    $region5: #{lit_aug_predictor_crossenc.1} parent=1 // loop_body
      %s19 = ssub.s32 %s14, 1
      %s20 = ssub.s32 %s14, 2
      %s27 = sadd.s32 1, %s22
      %p28 = scmp.ge.s32.totalorder %s27, 3
      %s29 = scalar_select %p28, 0, %s27
      %s30 = sadd.s32 1, %s21
      %s31 = scalar_select %p28, %s30, %s21
      %p32 = scmp.ge.s32.totalorder %s31, 2
      %s33 = scalar_select %p32, 0, %s31
      %s34 = ssub.s32 %s21, %s33
      %s35 = ssub.s32 %s22, %s29
      %s36 = sor.u32 %s34, %s35
      %p37 = scmp.eq.s32.totalorder %s36, 0
      %s39 = sadd.s32 %s38, 1
      %s40 = scalar_select %p37, %s38, %s39
      %p43 = pneg %p37
      %p44 = scmp.eq.s32.totalorder %s14, 5
      %p45 = por %p43, %p44
      %p46 = scmp.ne.s32.totalorder %s38, %s41
      %p47 = scmp.eq.s32.totalorder %s14, 0
      %p48 = por %p46, %p47
      %p49 = scmp.ne.s32.totalorder %s38, %s41
      %p50 = scmp.eq.s32.totalorder %s19, 5
      %p51 = por %p49, %p50
      %p52 = scmp.ne.s32.totalorder %s41, %s42
      %p53 = scmp.eq.s32.totalorder %s19, 0
      %p54 = por %p52, %p53
      %p55 = scmp.ne.s32.totalorder %s41, %s42
      %p56 = scmp.eq.s32.totalorder %s20, 5
      %p57 = por %p55, %p56
      %p59 = scmp.ne.s32.totalorder %s42, %s58
      %p60 = scmp.eq.s32.totalorder %s20, 0
      %p61 = por %p59, %p60
      %s62 = ssub.s32 %s21, %s33
      %s63 = ssub.s32 %s22, %s29
      %s64 = sor.u32 %s62, %s63
      %p65 = scmp.eq.s32.totalorder %s64, 0
      %s67 = sadd.s32 %s66, 1
      %s68 = scalar_select %p65, %s66, %s67
      %p71 = pneg %p65
      %p72 = scmp.eq.s32.totalorder %s14, 5
      %p73 = por %p71, %p72
      %p74 = scmp.ne.s32.totalorder %s66, %s69
      %p75 = scmp.eq.s32.totalorder %s14, 0
      %p76 = por %p74, %p75
      %p77 = scmp.ne.s32.totalorder %s66, %s69
      %p78 = scmp.eq.s32.totalorder %s19, 5
      %p79 = por %p77, %p78
      %p80 = scmp.ne.s32.totalorder %s69, %s70
      %p81 = scmp.eq.s32.totalorder %s19, 0
      %p82 = por %p80, %p81
      %p83 = scmp.ne.s32.totalorder %s69, %s70
      %p84 = scmp.eq.s32.totalorder %s20, 5
      %p85 = por %p83, %p84
      %p87 = scmp.ne.s32.totalorder %s70, %s86
      %p88 = scmp.eq.s32.totalorder %s20, 0
      %p89 = por %p87, %p88
      %s91 = sadd.s32 %s90, 1
      %p94 = scmp.eq.s32.totalorder %s14, 5
      %p95 = scmp.ne.s32.totalorder %s90, %s92
      %p96 = scmp.eq.s32.totalorder %s14, 0
      %p97 = por %p95, %p96
      %p98 = scmp.ne.s32.totalorder %s90, %s92
      %p99 = scmp.eq.s32.totalorder %s19, 5
      %p100 = por %p98, %p99
      %p101 = scmp.ne.s32.totalorder %s92, %s93
      %p102 = scmp.eq.s32.totalorder %s19, 0
      %p103 = por %p101, %p102
      %p104 = scmp.ne.s32.totalorder %s92, %s93
      %p105 = scmp.eq.s32.totalorder %s20, 5
      %p106 = por %p104, %p105
      %p108 = scmp.ne.s32.totalorder %s93, %s107
      %p109 = scmp.eq.s32.totalorder %s20, 0
      %p110 = por %p108, %p109
      %s112 = sadd.s32 %s111, 1
      %p115 = scmp.eq.s32.totalorder %s14, 5
      %p116 = scmp.ne.s32.totalorder %s111, %s113
      %p117 = scmp.eq.s32.totalorder %s14, 0
      %p118 = por %p116, %p117
      %p119 = scmp.ne.s32.totalorder %s111, %s113
      %p120 = scmp.eq.s32.totalorder %s19, 5
      %p121 = por %p119, %p120
      %p122 = scmp.ne.s32.totalorder %s113, %s114
      %p123 = scmp.eq.s32.totalorder %s19, 0
      %p124 = por %p122, %p123
      %p125 = scmp.ne.s32.totalorder %s113, %s114
      %p126 = scmp.eq.s32.totalorder %s20, 5
      %p127 = por %p125, %p126
      %p129 = scmp.ne.s32.totalorder %s114, %s128
      %p130 = scmp.eq.s32.totalorder %s20, 0
      %p131 = por %p129, %p130
      %s133 = sadd.s32 %s132, 1
      %p136 = scmp.eq.s32.totalorder %s14, 5
      %p137 = scmp.ne.s32.totalorder %s132, %s134
      %p138 = scmp.eq.s32.totalorder %s14, 0
      %p139 = por %p137, %p138
      %p140 = scmp.ne.s32.totalorder %s132, %s134
      %p141 = scmp.eq.s32.totalorder %s19, 5
      %p142 = por %p140, %p141
      %p143 = scmp.ne.s32.totalorder %s134, %s135
      %p144 = scmp.eq.s32.totalorder %s19, 0
      %p145 = por %p143, %p144
      %p146 = scmp.ne.s32.totalorder %s134, %s135
      %p147 = scmp.eq.s32.totalorder %s20, 5
      %p148 = por %p146, %p147
      %p150 = scmp.ne.s32.totalorder %s135, %s149
      %p151 = scmp.eq.s32.totalorder %s20, 0
      %p152 = por %p150, %p151
      %s154 = sadd.s32 %s153, 1
      %p157 = scmp.eq.s32.totalorder %s14, 5
      %p158 = scmp.ne.s32.totalorder %s153, %s155
      %p159 = scmp.eq.s32.totalorder %s14, 0
      %p160 = por %p158, %p159
      %p161 = scmp.ne.s32.totalorder %s153, %s155
      %p162 = scmp.eq.s32.totalorder %s19, 5
      %p163 = por %p161, %p162
      %p164 = scmp.ne.s32.totalorder %s155, %s156
      %p165 = scmp.eq.s32.totalorder %s19, 0
      %p166 = por %p164, %p165
      %p167 = scmp.ne.s32.totalorder %s155, %s156
      %p168 = scmp.eq.s32.totalorder %s20, 5
      %p169 = por %p167, %p168
      %p171 = scmp.ne.s32.totalorder %s156, %s170
      %p172 = scmp.eq.s32.totalorder %s20, 0
      %p173 = por %p171, %p172
      %s175 = sadd.s32 %s174, 1
      %p178 = scmp.eq.s32.totalorder %s14, 5
      %p179 = scmp.ne.s32.totalorder %s174, %s176
      %p180 = scmp.eq.s32.totalorder %s14, 0
      %p181 = por %p179, %p180
      %p182 = scmp.ne.s32.totalorder %s174, %s176
      %p183 = scmp.eq.s32.totalorder %s19, 5
      %p184 = por %p182, %p183
      %p185 = scmp.ne.s32.totalorder %s176, %s177
      %p186 = scmp.eq.s32.totalorder %s19, 0
      %p187 = por %p185, %p186
      %p188 = scmp.ne.s32.totalorder %s176, %s177
      %p189 = scmp.eq.s32.totalorder %s20, 5
      %p190 = por %p188, %p189
      %p192 = scmp.ne.s32.totalorder %s177, %s191
      %p193 = scmp.eq.s32.totalorder %s20, 0
      %p194 = por %p192, %p193
      %s195 = ssub.s32 %s21, %s33
      %p196 = scmp.eq.s32.totalorder %s195, 0
      %s198 = sadd.s32 %s197, 1
      %s199 = scalar_select %p196, %s197, %s198
      %p202 = pneg %p196
      %p203 = scmp.eq.s32.totalorder %s14, 5
      %p204 = por %p202, %p203
      %p205 = scmp.ne.s32.totalorder %s197, %s200
      %p206 = scmp.eq.s32.totalorder %s14, 0
      %p207 = por %p205, %p206
      %p208 = scmp.ne.s32.totalorder %s197, %s200
      %p209 = scmp.eq.s32.totalorder %s19, 5
      %p210 = por %p208, %p209
      %p211 = scmp.ne.s32.totalorder %s200, %s201
      %p212 = scmp.eq.s32.totalorder %s19, 0
      %p213 = por %p211, %p212
      %p214 = scmp.ne.s32.totalorder %s200, %s201
      %p215 = scmp.eq.s32.totalorder %s20, 5
      %p216 = por %p214, %p215
      %p218 = scmp.ne.s32.totalorder %s201, %s217
      %p219 = scmp.eq.s32.totalorder %s20, 0
      %p220 = por %p218, %p219
      %p221 = scmp.le.s32.totalorder 1, %s14
      %p222 = scmp.lt.s32.totalorder %s14, 7
      %p223 = pnand %p221, %p222
      %p224 = pneg %p223
      // Predicated region
      $region9: #{lit_aug_predictor_crossenc.1} parent=5 // pred_check
        _
      $region10: #{lit_aug_predictor_crossenc.1} parent=5 // pred_check_branch
        %226 = sbr.rel (%p223) target = $region12
      $region11: #{lit_aug_predictor_crossenc.1} parent=5 // pred_region
        %s227 = ssub.s32 %s14, 1
        // Predicated region
        $region13: #{lit_aug_predictor_crossenc.1} parent=11 // pred_check
          %p228 = pneg %p103
        $region14: #{lit_aug_predictor_crossenc.1} parent=11 // pred_check_branch
          %230 = sbr.rel (%p228) target = $region16
        $region15: #{lit_aug_predictor_crossenc.1} parent=11 // pred_region
          %s232 = ssub.s32 32, 32
          %233 = vsyncadd [#allocation5], %s232
          %s235 = sshll.u32 %s2, 4
          %s236 = int_to_ptr.vmem [resolvable:$true] %s235
          %238 = dma.vmem_to_smem %s236, 32, [#allocation4], [#allocation5]
        $region16: #{lit_aug_predictor_crossenc.1} parent=11 // pred_fallthru
          _
        // Predicated region
        $region17: #{lit_aug_predictor_crossenc.1} parent=11 // pred_check
          %p239 = pneg %p124
        $region18: #{lit_aug_predictor_crossenc.1} parent=11 // pred_check_branch
          %241 = sbr.rel (%p239) target = $region20
        $region19: #{lit_aug_predictor_crossenc.1} parent=11 // pred_region
          _
        $region20: #{lit_aug_predictor_crossenc.1} parent=11 // pred_fallthru
          _
        // Predicated region
        $region21: #{lit_aug_predictor_crossenc.1} parent=11 // pred_check
          %p242 = pneg %p145
        $region22: #{lit_aug_predictor_crossenc.1} parent=11 // pred_check_branch
          %244 = sbr.rel (%p242) target = $region24
        $region23: #{lit_aug_predictor_crossenc.1} parent=11 // pred_region
          _
        $region24: #{lit_aug_predictor_crossenc.1} parent=11 // pred_fallthru
          _
        // Predicated region
        $region25: #{lit_aug_predictor_crossenc.1} parent=11 // pred_check
          %p245 = pneg %p166
        $region26: #{lit_aug_predictor_crossenc.1} parent=11 // pred_check_branch
          %247 = sbr.rel (%p245) target = $region28
        $region27: #{lit_aug_predictor_crossenc.1} parent=11 // pred_region
          _
        $region28: #{lit_aug_predictor_crossenc.1} parent=11 // pred_fallthru
          _
        // Predicated region
        $region29: #{lit_aug_predictor_crossenc.1} parent=11 // pred_check
          %p248 = pneg %p187
        $region30: #{lit_aug_predictor_crossenc.1} parent=11 // pred_check_branch
          %250 = sbr.rel (%p248) target = $region32
        $region31: #{lit_aug_predictor_crossenc.1} parent=11 // pred_region
          _
        $region32: #{lit_aug_predictor_crossenc.1} parent=11 // pred_fallthru
          _
      $region12: #{lit_aug_predictor_crossenc.1} parent=5 // pred_fallthru
        _
      %p251 = scmp.lt.s32.totalorder %s14, 6
      // Predicated region
      $region33: #{lit_aug_predictor_crossenc.1} parent=5 // pred_check
        %p252 = pneg %p251
      $region34: #{lit_aug_predictor_crossenc.1} parent=5 // pred_check_branch
        %254 = sbr.rel (%p252) target = $region36
      $region35: #{lit_aug_predictor_crossenc.1} parent=5 // pred_region
        // Predicated region
        $region37: #{lit_aug_predictor_crossenc.1} parent=35 // pred_check
          %p255 = pneg %p48
        $region38: #{lit_aug_predictor_crossenc.1} parent=35 // pred_check_branch
          %257 = sbr.rel (%p255) target = $region40
        $region39: #{lit_aug_predictor_crossenc.1} parent=35 // pred_region
          %p258 = scmp.lt.s32.totalorder %s21, 1
          %s259 = scalar_select %p258, %s21, 1
          %p260 = scmp.lt.s32.totalorder %s22, 2
          %s261 = scalar_select %p260, %s22, 2
          %s262 = smul.addr %s259, 3
          %s263 = sadd.s32 %s261, %s262
          %s264 = smul.addr %s263, 8
          %s265 = scalar_lea.vmem %s0, %s264
        $region40: #{lit_aug_predictor_crossenc.1} parent=35 // pred_fallthru
          _
        // Predicated region
        $region41: #{lit_aug_predictor_crossenc.1} parent=35 // pred_check
          %p266 = pneg %p76
        $region42: #{lit_aug_predictor_crossenc.1} parent=35 // pred_check_branch
          %268 = sbr.rel (%p266) target = $region44
        $region43: #{lit_aug_predictor_crossenc.1} parent=35 // pred_region
          %p269 = scmp.lt.s32.totalorder %s21, 1
          %s270 = scalar_select %p269, %s21, 1
          %p271 = scmp.lt.s32.totalorder %s22, 2
          %s272 = scalar_select %p271, %s22, 2
          %s273 = smul.addr %s270, 3
          %s274 = sadd.s32 %s272, %s273
          %s275 = scalar_lea.vmem %s1, %s274
        $region44: #{lit_aug_predictor_crossenc.1} parent=35 // pred_fallthru
          _
      $region36: #{lit_aug_predictor_crossenc.1} parent=5 // pred_fallthru
        _
      %p276 = scmp.le.s32.totalorder 1, %s14
      %p277 = scmp.lt.s32.totalorder %s14, 7
      %p278 = pnand %p276, %p277
      %p279 = pneg %p278
      // Predicated region
      $region45: #{lit_aug_predictor_crossenc.1} parent=5 // pred_check
        _
      $region46: #{lit_aug_predictor_crossenc.1} parent=5 // pred_check_branch
        %281 = sbr.rel (%p278) target = $region48
      $region47: #{lit_aug_predictor_crossenc.1} parent=5 // pred_region
        %s282 = ssub.s32 %s14, 1
        // Predicated region
        $region49: #{lit_aug_predictor_crossenc.1} parent=47 // pred_check
          %p283 = pneg %p103
        $region50: #{lit_aug_predictor_crossenc.1} parent=47 // pred_check_branch
          %285 = sbr.rel (%p283) target = $region52
        $region51: #{lit_aug_predictor_crossenc.1} parent=47 // pred_region
          %286 = dma.done [#allocation5], 32
        $region52: #{lit_aug_predictor_crossenc.1} parent=47 // pred_fallthru
          _
        %287 = sfence
        %p288 = scmp.lt.s32.totalorder %s23, 1
        %s289 = scalar_select %p288, %s23, 1
        %p290 = scmp.lt.s32.totalorder %s24, 2
        %s291 = scalar_select %p290, %s24, 2
        %s292 = smul.addr %s289, 3
        %s293 = sadd.s32 %s291, %s292
        %s294 = smul.addr %s293, 8
        %s295 = scalar_lea.vmem %s0, %s294
        %p296 = pneg %p54
        %p297 = pneg %p51
        %p298 = scmp.lt.s32.totalorder %s23, 1
        %s299 = scalar_select %p298, %s23, 1
        %p300 = scmp.lt.s32.totalorder %s24, 2
        %s301 = scalar_select %p300, %s24, 2
        %s302 = smul.addr %s299, 3
        %s303 = sadd.s32 %s301, %s302
        %s304 = scalar_lea.vmem %s1, %s303
        %p305 = pneg %p82
        %p306 = pneg %p79
        %p307 = pneg %p103
        %p308 = pneg %p100
        %p309 = pneg %p124
        %p310 = pneg %p121
        %p311 = pneg %p145
        %p312 = pneg %p142
        %p313 = pneg %p166
        %p314 = pneg %p163
        %p315 = pneg %p187
        %p316 = pneg %p184
        %p317 = pneg %p213
        %p318 = pneg %p210
        %p319 = scmp.lt.s32.totalorder %s23, 1
        %s320 = scalar_select %p319, %s23, 1
        %s321 = smul.addr %s320, 8
        %s322 = scalar_lea.vmem %s7, %s321
        %p323 = scmp.lt.s32.totalorder %s23, 1
        %s324 = scalar_select %p323, %s23, 1
        %p325 = scmp.lt.s32.totalorder %s24, 2
        %s326 = scalar_select %p325, %s24, 2
        %s327 = smul.addr %s324, 3
        %s328 = sadd.s32 %s326, %s327
        %s329 = smul.addr %s328, 8
        %s330 = scalar_lea.vmem %s0, %s329
        %p331 = scmp.lt.s32.totalorder %s23, 1
        %s332 = scalar_select %p331, %s23, 1
        %p333 = scmp.lt.s32.totalorder %s24, 2
        %s334 = scalar_select %p333, %s24, 2
        %s335 = smul.addr %s332, 3
        %s336 = sadd.s32 %s334, %s335
        %s337 = scalar_lea.vmem %s1, %s336
        %p338 = scmp.lt.s32.totalorder %s23, 1
        %s339 = scalar_select %p338, %s23, 1
        %s340 = smul.addr %s339, 8
        %s341 = scalar_lea.vmem %s7, %s340
        %p343 = scmp.eq.s32.totalorder %s24, 0
        // Predicated region
        $region53: #{lit_aug_predictor_crossenc.1} parent=47 // pred_check
          %p344 = pneg %p343
        $region54: #{lit_aug_predictor_crossenc.1} parent=47 // pred_check_branch
          %346 = sbr.rel (%p344) target = $region56
        $region55: #{lit_aug_predictor_crossenc.1} parent=47 // pred_region
          %vm347 = vcmask 253952
          %348 = vst.msk [vmem:[#allocation2] sm:$0x1] %vm347, 0.0
          %349 = vst [vmem:[#allocation3] sm:$0x1] 0.0
        $region56: #{lit_aug_predictor_crossenc.1} parent=47 // pred_fallthru
          _
        %v350 = vld [vmem:[%s6 + $0x1] sm:$0x1]
        %v351 = vld [vmem:[%s6 + $0x2] sm:$0x1]
        %v352 = vld [vmem:[%s6 + $0x3] sm:$0x1]
        %v353 = vld [vmem:[%s6 + $0x4] sm:$0x1]
        %v354 = vld [vmem:[%s330] sm:$0xff]
        %vm355 = vcmask 261120
        %v356 = vsel %vm355, %v354, 0.0
        %357 = vadd.xlane.f32.xlu0 %v356
        %v358 = vpop.xlane.xlu0 %357
        %v359 = vrcp.pop 32.0
        %v360 = vmul.f32 %v358, %v359
        %v361 = vsub.f32 %v354, %v360
        %v362 = vmul.f32 %v361, %v361
        %v363 = vsel %vm355, %v362, 0.0
        %364 = vadd.xlane.f32.xlu0 %v363
        %v365 = vpop.xlane.xlu0 %364
        %v366 = vmul.f32 %v365, %v359
        %v367 = vadd.f32 %v366, 1e-12
        %v368 = vrsqrt.pop %v367
        %v369 = vmul.f32 %v361, %v368
        %v370 = vlaneseq
        %v371 = vshrl.u32 %v370, 7
        %v372 = vsub.s32 0, %v371
        %v373 = vrot.slane %v350, %v372
        %v374 = vmul.f32 %v369, %v373
        %376 = vrot.lane.b32.xlu0 %v373, 96
        %v377 = vpop.permute.xlu0 %376
        %v379 = vadd.f32 %v374, %v377
        %v380 = vpack.c.bf16 %v379, %v379
        %v381 = vld [vmem:[%s3] sm:$0xf]
        %v382 = vld [vmem:[%s3 + $0x4] sm:$0xf]
        %v383 = vld [vmem:[%s3 + $0x8] sm:$0xf]
        %v384 = vld [vmem:[%s3 + $0xc] sm:$0xf]
        %v385 = vld [vmem:[%s6] sm:$0x1]
        %v386 = vlaneseq
        %v387 = vshrl.u32 %v386, 7
        %v388 = vsub.s32 0, %v387
        %v389 = vrot.slane %v385, %v388
        %v394 = vunpack.c.l.b16 %v381
        %v395 = vunpack.c.l.b16 %v382
        %v396 = vunpack.c.l.b16 %v383
        %v397 = vunpack.c.l.b16 %v384
        %v398 = vpack.c.b16 %v395, %v394
        %v399 = vpack.c.b16 %v397, %v396
        %v403 = vsel %vm355, %v380, 0
        %405 = vmatprep.subr.bf16.mxu0 0
        %406 = vmatpush1.bf16.msra.mxu0 %v398
        %407 = vmatprep.subr.bf16.mxu0 0
        %408 = vmatpush1.bf16.msra.mxu0 %v399
        %409 = vmatprep.subr.bf16.mxu0 0
        %410 = vmatpush1.bf16.msra.mxu0 0
        %411 = vmatprep.subr.bf16.mxu0 0
        %412 = vmatpush1.bf16.msra.mxu0 0
        %413 = vmatprep.subr.bf16.mxu0 0
        %414 = vmatpush1.bf16.msra.mxu0 0
        %415 = vmatprep.subr.bf16.mxu0 0
        %416 = vmatpush1.bf16.msra.mxu0 0
        %417 = vmatprep.subr.bf16.mxu0 0
        %418 = vmatpush1.bf16.msra.mxu0 0
        %419 = vmatprep.subr.bf16.mxu0 0
        %420 = vmatpush1.bf16.msra.mxu0 0
        %421 = vmatprep.subr.bf16.mxu0 0
        %422 = vmatpush1.bf16.msra.mxu0 0
        %423 = vmatprep.subr.bf16.mxu0 0
        %424 = vmatpush1.bf16.msra.mxu0 0
        %425 = vmatprep.subr.bf16.mxu0 0
        %426 = vmatpush1.bf16.msra.mxu0 0
        %427 = vmatprep.subr.bf16.mxu0 0
        %428 = vmatpush1.bf16.msra.mxu0 0
        %429 = vmatprep.subr.bf16.mxu0 0
        %430 = vmatpush1.bf16.msra.mxu0 0
        %431 = vmatprep.subr.bf16.mxu0 0
        %432 = vmatpush1.bf16.msra.mxu0 0
        %433 = vmatprep.subr.bf16.mxu0 0
        %434 = vmatpush1.bf16.msra.mxu0 0
        %435 = vmatprep.subr.bf16.mxu0 0
        %436 = vmatpush1.bf16.msra.mxu0 0
        %437 = vmatprep.mubr.bf16.mxu0 0
        %438 = vmatmul.mubr.bf16.gmra.mrb[0].mxu0 %v403
        %v439 = vpop.f32.mrb[0].mxu0
        %v440 = vadd.f32 %v389, %v439
        %v441 = vpop.f32.mrb[0].mxu0
        %v442 = vpop.f32.mrb[0].mxu0
        %v443 = vpop.f32.mrb[0].mxu0
        %444 = vdwg.mxu0
        %v445 = vpack.c.bf16 %v440, %v440
        %v446 = vld [vmem:[%s337] sm:$0x1]
        %v448 = vlaneseq
        %v449 = vshrl.u32 %v448, 7
        %v450 = vsub.s32 0, %v449
        %v451 = vrot.slane %v446, %v450
        %454 = vrot.lane.b32.xlu0 %v445, 96
        %v455 = vpop.permute.xlu0 %454
        %v457 = vsel %vm355, %v445, 0
        %v460 = vsel %vm355, %v455, 0
        %462 = vmatprep.subr.bf16.mxu0 0
        %463 = vmatpush1.bf16.xpose.msra.mxu0 %v460
        %464 = vmatprep.subr.bf16.mxu0 0
        %465 = vmatpush1.bf16.xpose.msra.mxu0 0
        %466 = vmatprep.subr.bf16.mxu0 0
        %467 = vmatpush1.bf16.xpose.msra.mxu0 0
        %468 = vmatprep.subr.bf16.mxu0 0
        %469 = vmatpush1.bf16.xpose.msra.mxu0 0
        %470 = vmatprep.subr.bf16.mxu0 0
        %471 = vmatpush1.bf16.xpose.msra.mxu0 0
        %472 = vmatprep.subr.bf16.mxu0 0
        %473 = vmatpush1.bf16.xpose.msra.mxu0 0
        %474 = vmatprep.subr.bf16.mxu0 0
        %475 = vmatpush1.bf16.xpose.msra.mxu0 0
        %476 = vmatprep.subr.bf16.mxu0 0
        %477 = vmatpush1.bf16.xpose.msra.mxu0 0
        %478 = vmatprep.subr.bf16.mxu0 0
        %479 = vmatpush1.bf16.xpose.msra.mxu0 0
        %480 = vmatprep.subr.bf16.mxu0 0
        %481 = vmatpush1.bf16.xpose.msra.mxu0 0
        %482 = vmatprep.subr.bf16.mxu0 0
        %483 = vmatpush1.bf16.xpose.msra.mxu0 0
        %484 = vmatprep.subr.bf16.mxu0 0
        %485 = vmatpush1.bf16.xpose.msra.mxu0 0
        %486 = vmatprep.subr.bf16.mxu0 0
        %487 = vmatpush1.bf16.xpose.msra.mxu0 0
        %488 = vmatprep.subr.bf16.mxu0 0
        %489 = vmatpush1.bf16.xpose.msra.mxu0 0
        %490 = vmatprep.subr.bf16.mxu0 0
        %491 = vmatpush1.bf16.xpose.msra.mxu0 0
        %492 = vmatprep.subr.bf16.mxu0 0
        %493 = vmatpush1.bf16.xpose.msra.mxu0 0
        %494 = vmatprep.mubr.bf16.mxu0 0
        %495 = vmatmul.mubr.bf16.gmra.mrb[0].mxu0 %v457
        %v496 = vpop.f32.mrb[0].mxu0
        %v497 = vadd.f32 %v451, %v496
        %v498 = vpop.f32.mrb[0].mxu0
        %v499 = vpop.f32.mrb[0].mxu0
        %v500 = vpop.f32.mrb[0].mxu0
        %501 = vdwg.mxu0
        %vm502 = vcmask 64512
        %v503 = vsel %vm502, %v497, -inf
        %504 = vmax.xlane.f32.xlu0 %v503
        %v505 = vpop.xlane.xlu0 %504
        %v506 = vsub.f32 %v497, %v505
        %v507 = vmul.f32 %v506, 1.442695
        %v508 = vpow.pop %v507
        %v509 = vsel %vm502, %v508, 0.0
        %510 = vadd.xlane.f32.xlu0 %v509
        %v511 = vpop.xlane.xlu0 %510
        %v512 = vrcp.pop %v511
        %v513 = vmul.f32 %v508, %v512
        %v514 = vpack.c.bf16 %v513, %v513
        %515 = vrot.lane.b32.xlu0 %v445, 64
        %v516 = vpop.permute.xlu0 %515
        %v518 = vsel %vm502, %v514, 0
        %vm520 = vcmask 1043456
        %v522 = vsel %vm520, %v516, 0
        %524 = vmatprep.subr.bf16.mxu0 0
        %525 = vmatpush1.bf16.msra.mxu0 %v522
        %526 = vmatprep.subr.bf16.mxu0 0
        %527 = vmatpush1.bf16.msra.mxu0 0
        %528 = vmatprep.subr.bf16.mxu0 0
        %529 = vmatpush1.bf16.msra.mxu0 0
        %530 = vmatprep.subr.bf16.mxu0 0
        %531 = vmatpush1.bf16.msra.mxu0 0
        %532 = vmatprep.subr.bf16.mxu0 0
        %533 = vmatpush1.bf16.msra.mxu0 0
        %534 = vmatprep.subr.bf16.mxu0 0
        %535 = vmatpush1.bf16.msra.mxu0 0
        %536 = vmatprep.subr.bf16.mxu0 0
        %537 = vmatpush1.bf16.msra.mxu0 0
        %538 = vmatprep.subr.bf16.mxu0 0
        %539 = vmatpush1.bf16.msra.mxu0 0
        %540 = vmatprep.subr.bf16.mxu0 0
        %541 = vmatpush1.bf16.msra.mxu0 0
        %542 = vmatprep.subr.bf16.mxu0 0
        %543 = vmatpush1.bf16.msra.mxu0 0
        %544 = vmatprep.subr.bf16.mxu0 0
        %545 = vmatpush1.bf16.msra.mxu0 0
        %546 = vmatprep.subr.bf16.mxu0 0
        %547 = vmatpush1.bf16.msra.mxu0 0
        %548 = vmatprep.subr.bf16.mxu0 0
        %549 = vmatpush1.bf16.msra.mxu0 0
        %550 = vmatprep.subr.bf16.mxu0 0
        %551 = vmatpush1.bf16.msra.mxu0 0
        %552 = vmatprep.subr.bf16.mxu0 0
        %553 = vmatpush1.bf16.msra.mxu0 0
        %554 = vmatprep.subr.bf16.mxu0 0
        %555 = vmatpush1.bf16.msra.mxu0 0
        %556 = vmatprep.mubr.bf16.mxu0 0
        %557 = vmatmul.mubr.bf16.gmra.mrb[0].mxu0 %v518
        %v558 = vpop.f32.mrb[0].mxu0
        %v559 = vadd.f32 0.0, %v558
        %v560 = vpop.f32.mrb[0].mxu0
        %v561 = vpop.f32.mrb[0].mxu0
        %v562 = vpop.f32.mrb[0].mxu0
        %563 = vdwg.mxu0
        %v564 = vld [vmem:[%s4] sm:$0xf]
        %v565 = vld [vmem:[%s4 + $0x4] sm:$0xf]
        %v566 = vld [vmem:[%s4 + $0x8] sm:$0xf]
        %v567 = vld [vmem:[%s4 + $0xc] sm:$0xf]
        %v568 = vpack.c.bf16 %v559, %v559
        %v569 = vlaneseq
        %v570 = vshrl.u32 %v569, 7
        %v571 = vsub.s32 0, %v570
        %v572 = vrot.slane %v351, %v571
        %v577 = vunpack.c.l.b16 %v564
        %v578 = vunpack.c.l.b16 %v565
        %v579 = vunpack.c.l.b16 %v566
        %v580 = vunpack.c.l.b16 %v567
        %v581 = vpack.c.b16 %v578, %v577
        %v582 = vpack.c.b16 %v580, %v579
        %586 = vrot.lane.b32.xlu0 %v572, 64
        %v587 = vpop.permute.xlu0 %586
        %v590 = vsel %vm355, %v568, 0
        %592 = vmatprep.subr.bf16.mxu0 0
        %593 = vmatpush1.bf16.msra.mxu0 %v581
        %594 = vmatprep.subr.bf16.mxu0 0
        %595 = vmatpush1.bf16.msra.mxu0 %v582
        %596 = vmatprep.subr.bf16.mxu0 0
        %597 = vmatpush1.bf16.msra.mxu0 0
        %598 = vmatprep.subr.bf16.mxu0 0
        %599 = vmatpush1.bf16.msra.mxu0 0
        %600 = vmatprep.subr.bf16.mxu0 0
        %601 = vmatpush1.bf16.msra.mxu0 0
        %602 = vmatprep.subr.bf16.mxu0 0
        %603 = vmatpush1.bf16.msra.mxu0 0
        %604 = vmatprep.subr.bf16.mxu0 0
        %605 = vmatpush1.bf16.msra.mxu0 0
        %606 = vmatprep.subr.bf16.mxu0 0
        %607 = vmatpush1.bf16.msra.mxu0 0
        %608 = vmatprep.subr.bf16.mxu0 0
        %609 = vmatpush1.bf16.msra.mxu0 0
        %610 = vmatprep.subr.bf16.mxu0 0
        %611 = vmatpush1.bf16.msra.mxu0 0
        %612 = vmatprep.subr.bf16.mxu0 0
        %613 = vmatpush1.bf16.msra.mxu0 0
        %614 = vmatprep.subr.bf16.mxu0 0
        %615 = vmatpush1.bf16.msra.mxu0 0
        %616 = vmatprep.subr.bf16.mxu0 0
        %617 = vmatpush1.bf16.msra.mxu0 0
        %618 = vmatprep.subr.bf16.mxu0 0
        %619 = vmatpush1.bf16.msra.mxu0 0
        %620 = vmatprep.subr.bf16.mxu0 0
        %621 = vmatpush1.bf16.msra.mxu0 0
        %622 = vmatprep.subr.bf16.mxu0 0
        %623 = vmatpush1.bf16.msra.mxu0 0
        %624 = vmatprep.mubr.bf16.mxu0 0
        %625 = vmatmul.mubr.bf16.gmra.mrb[0].mxu0 %v590
        %v626 = vpop.f32.mrb[0].mxu0
        %v627 = vadd.f32 %v587, %v626
        %v628 = vpop.f32.mrb[0].mxu0
        %v629 = vpop.f32.mrb[0].mxu0
        %v630 = vpop.f32.mrb[0].mxu0
        %631 = vdwg.mxu0
        %v632 = vadd.f32 %v379, %v627
        %v633 = vsel %vm355, %v632, 0.0
        %634 = vadd.xlane.f32.xlu0 %v633
        %v635 = vpop.xlane.xlu0 %634
        %v636 = vmul.f32 %v635, %v359
        %v637 = vsub.f32 %v632, %v636
        %v638 = vmul.f32 %v637, %v637
        %v639 = vsel %vm355, %v638, 0.0
        %640 = vadd.xlane.f32.xlu0 %v639
        %v641 = vpop.xlane.xlu0 %640
        %v642 = vmul.f32 %v641, %v359
        %v643 = vadd.f32 %v642, 1e-12
        %v644 = vrsqrt.pop %v643
        %v645 = vmul.f32 %v637, %v644
        %646 = vrot.lane.b32.xlu0 %v373, 64
        %v647 = vpop.permute.xlu0 %646
        %v649 = vmul.f32 %v645, %v647
        %650 = vrot.lane.b32.xlu0 %v373, 32
        %v651 = vpop.permute.xlu0 %650
        %v653 = vadd.f32 %v649, %v651
        %v654 = vpack.c.bf16 %v653, %v653
        %v655 = vlaneseq
        %v656 = vshrl.u32 %v655, 7
        %v657 = vsub.s32 0, %v656
        %v658 = vrot.slane %v352, %v657
        %659 = vrot.lane.b32.xlu0 %v581, 64
        %v660 = vpop.permute.xlu0 %659
        %661 = vrot.lane.b32.xlu0 %v582, 64
        %v662 = vpop.permute.xlu0 %661
        %v666 = vsel %vm355, %v654, 0
        %668 = vmatprep.subr.bf16.mxu0 0
        %669 = vmatpush1.bf16.msra.mxu0 %v660
        %670 = vmatprep.subr.bf16.mxu0 0
        %671 = vmatpush1.bf16.msra.mxu0 %v662
        %672 = vmatprep.subr.bf16.mxu0 0
        %673 = vmatpush1.bf16.msra.mxu0 0
        %674 = vmatprep.subr.bf16.mxu0 0
        %675 = vmatpush1.bf16.msra.mxu0 0
        %676 = vmatprep.subr.bf16.mxu0 0
        %677 = vmatpush1.bf16.msra.mxu0 0
        %678 = vmatprep.subr.bf16.mxu0 0
        %679 = vmatpush1.bf16.msra.mxu0 0
        %680 = vmatprep.subr.bf16.mxu0 0
        %681 = vmatpush1.bf16.msra.mxu0 0
        %682 = vmatprep.subr.bf16.mxu0 0
        %683 = vmatpush1.bf16.msra.mxu0 0
        %684 = vmatprep.subr.bf16.mxu0 0
        %685 = vmatpush1.bf16.msra.mxu0 0
        %686 = vmatprep.subr.bf16.mxu0 0
        %687 = vmatpush1.bf16.msra.mxu0 0
        %688 = vmatprep.subr.bf16.mxu0 0
        %689 = vmatpush1.bf16.msra.mxu0 0
        %690 = vmatprep.subr.bf16.mxu0 0
        %691 = vmatpush1.bf16.msra.mxu0 0
        %692 = vmatprep.subr.bf16.mxu0 0
        %693 = vmatpush1.bf16.msra.mxu0 0
        %694 = vmatprep.subr.bf16.mxu0 0
        %695 = vmatpush1.bf16.msra.mxu0 0
        %696 = vmatprep.subr.bf16.mxu0 0
        %697 = vmatpush1.bf16.msra.mxu0 0
        %698 = vmatprep.subr.bf16.mxu0 0
        %699 = vmatpush1.bf16.msra.mxu0 0
        %700 = vmatprep.mubr.bf16.mxu0 0
        %701 = vmatmul.mubr.bf16.gmra.mrb[0].mxu0 %v666
        %v702 = vpop.f32.mrb[0].mxu0
        %v703 = vadd.f32 %v658, %v702
        %v704 = vpop.f32.mrb[0].mxu0
        %v705 = vpop.f32.mrb[0].mxu0
        %v706 = vpop.f32.mrb[0].mxu0
        %707 = vdwg.mxu0
        %v708 = vmul.f32 %v703, 0.5
        %v709 = vmul.f32 %v703, 0.044715
        %v710 = vmul.f32 %v709, %v703
        %v711 = vmul.f32 %v710, %v703
        %v712 = vadd.f32 %v703, %v711
        %v713 = vmul.f32 %v712, 0.7978846
        %v714 = vtanh.pop %v713
        %v715 = vadd.f32 %v714, 1.0
        %v716 = vmul.f32 %v708, %v715
        %v717 = vld [vmem:[%s4] sm:$0xf]
        %v718 = vld [vmem:[%s4 + $0x4] sm:$0xf]
        %v719 = vld [vmem:[%s4 + $0x8] sm:$0xf]
        %v720 = vld [vmem:[%s4 + $0xc] sm:$0xf]
        %v721 = vld [vmem:[%s4 + $0x10] sm:$0xf]
        %v722 = vld [vmem:[%s4 + $0x14] sm:$0xf]
        %v723 = vld [vmem:[%s4 + $0x18] sm:$0xf]
        %v724 = vld [vmem:[%s4 + $0x1c] sm:$0xf]
        %v725 = vpack.c.bf16 %v716, %v716
        %v734 = vunpack.c.l.b16 %v717
        %v735 = vunpack.c.l.b16 %v718
        %v736 = vunpack.c.l.b16 %v719
        %v737 = vunpack.c.l.b16 %v720
        %v738 = vunpack.c.l.b16 %v721
        %v739 = vunpack.c.l.b16 %v722
        %v740 = vunpack.c.l.b16 %v723
        %v741 = vunpack.c.l.b16 %v724
        %v742 = vpack.c.b16 %v735, %v734
        %v743 = vpack.c.b16 %v737, %v736
        %v744 = vpack.c.b16 %v739, %v738
        %v745 = vpack.c.b16 %v741, %v740
        %746 = vrot.lane.b32.xlu0 %v742, 96
        %v747 = vpop.permute.xlu0 %746
        %748 = vrot.lane.b32.xlu0 %v743, 96
        %v749 = vpop.permute.xlu0 %748
        %750 = vrot.lane.b32.xlu0 %v744, 96
        %v751 = vpop.permute.xlu0 %750
        %752 = vrot.lane.b32.xlu0 %v745, 96
        %v753 = vpop.permute.xlu0 %752
        %759 = vrot.lane.b32.xlu0 %v658, 64
        %v760 = vpop.permute.xlu0 %759
        %vm762 = vcmask 523264
        %v764 = vsel %vm762, %v725, 0
        %766 = vmatprep.subr.bf16.mxu0 0
        %767 = vmatpush1.bf16.msra.mxu0 %v747
        %768 = vmatprep.subr.bf16.mxu0 0
        %769 = vmatpush1.bf16.msra.mxu0 %v749
        %770 = vmatprep.subr.bf16.mxu0 0
        %771 = vmatpush1.bf16.msra.mxu0 %v751
        %772 = vmatprep.subr.bf16.mxu0 0
        %773 = vmatpush1.bf16.msra.mxu0 %v753
        %774 = vmatprep.subr.bf16.mxu0 0
        %775 = vmatpush1.bf16.msra.mxu0 0
        %776 = vmatprep.subr.bf16.mxu0 0
        %777 = vmatpush1.bf16.msra.mxu0 0
        %778 = vmatprep.subr.bf16.mxu0 0
        %779 = vmatpush1.bf16.msra.mxu0 0
        %780 = vmatprep.subr.bf16.mxu0 0
        %781 = vmatpush1.bf16.msra.mxu0 0
        %782 = vmatprep.subr.bf16.mxu0 0
        %783 = vmatpush1.bf16.msra.mxu0 0
        %784 = vmatprep.subr.bf16.mxu0 0
        %785 = vmatpush1.bf16.msra.mxu0 0
        %786 = vmatprep.subr.bf16.mxu0 0
        %787 = vmatpush1.bf16.msra.mxu0 0
        %788 = vmatprep.subr.bf16.mxu0 0
        %789 = vmatpush1.bf16.msra.mxu0 0
        %790 = vmatprep.subr.bf16.mxu0 0
        %791 = vmatpush1.bf16.msra.mxu0 0
        %792 = vmatprep.subr.bf16.mxu0 0
        %793 = vmatpush1.bf16.msra.mxu0 0
        %794 = vmatprep.subr.bf16.mxu0 0
        %795 = vmatpush1.bf16.msra.mxu0 0
        %796 = vmatprep.subr.bf16.mxu0 0
        %797 = vmatpush1.bf16.msra.mxu0 0
        %798 = vmatprep.mubr.bf16.mxu0 0
        %799 = vmatmul.mubr.bf16.gmra.mrb[0].mxu0 %v764
        %v800 = vpop.f32.mrb[0].mxu0
        %v801 = vadd.f32 %v760, %v800
        %v802 = vpop.f32.mrb[0].mxu0
        %v803 = vpop.f32.mrb[0].mxu0
        %v804 = vpop.f32.mrb[0].mxu0
        %805 = vdwg.mxu0
        %v806 = vadd.f32 %v653, %v801
        %v807 = vsel %vm355, %v806, 0.0
        %808 = vadd.xlane.f32.xlu0 %v807
        %v809 = vpop.xlane.xlu0 %808
        %v810 = vmul.f32 %v809, %v359
        %v811 = vsub.f32 %v806, %v810
        %v812 = vmul.f32 %v811, %v811
        %v813 = vsel %vm355, %v812, 0.0
        %814 = vadd.xlane.f32.xlu0 %v813
        %v815 = vpop.xlane.xlu0 %814
        %v816 = vmul.f32 %v815, %v359
        %v817 = vadd.f32 %v816, 1e-12
        %v818 = vrsqrt.pop %v817
        %v819 = vmul.f32 %v811, %v818
        %v820 = vmul.f32 %v819, %v572
        %821 = vrot.lane.b32.xlu0 %v572, 96
        %v822 = vpop.permute.xlu0 %821
        %v824 = vadd.f32 %v820, %v822
        %v825 = vpack.c.bf16 %v824, %v824
        %829 = vrot.lane.b32.xlu0 %v351, 32
        %v830 = vpop.permute.xlu0 %829
        %v833 = vsel %vm355, %v825, 0
        %835 = vmatprep.subr.bf16.mxu0 0
        %836 = vmatpush1.bf16.msra.mxu0 %v744
        %837 = vmatprep.subr.bf16.mxu0 0
        %838 = vmatpush1.bf16.msra.mxu0 %v745
        %839 = vmatprep.subr.bf16.mxu0 0
        %840 = vmatpush1.bf16.msra.mxu0 0
        %841 = vmatprep.subr.bf16.mxu0 0
        %842 = vmatpush1.bf16.msra.mxu0 0
        %843 = vmatprep.subr.bf16.mxu0 0
        %844 = vmatpush1.bf16.msra.mxu0 0
        %845 = vmatprep.subr.bf16.mxu0 0
        %846 = vmatpush1.bf16.msra.mxu0 0
        %847 = vmatprep.subr.bf16.mxu0 0
        %848 = vmatpush1.bf16.msra.mxu0 0
        %849 = vmatprep.subr.bf16.mxu0 0
        %850 = vmatpush1.bf16.msra.mxu0 0
        %851 = vmatprep.subr.bf16.mxu0 0
        %852 = vmatpush1.bf16.msra.mxu0 0
        %853 = vmatprep.subr.bf16.mxu0 0
        %854 = vmatpush1.bf16.msra.mxu0 0
        %855 = vmatprep.subr.bf16.mxu0 0
        %856 = vmatpush1.bf16.msra.mxu0 0
        %857 = vmatprep.subr.bf16.mxu0 0
        %858 = vmatpush1.bf16.msra.mxu0 0
        %859 = vmatprep.subr.bf16.mxu0 0
        %860 = vmatpush1.bf16.msra.mxu0 0
        %861 = vmatprep.subr.bf16.mxu0 0
        %862 = vmatpush1.bf16.msra.mxu0 0
        %863 = vmatprep.subr.bf16.mxu0 0
        %864 = vmatpush1.bf16.msra.mxu0 0
        %865 = vmatprep.subr.bf16.mxu0 0
        %866 = vmatpush1.bf16.msra.mxu0 0
        %867 = vmatprep.mubr.bf16.mxu0 0
        %868 = vmatmul.mubr.bf16.gmra.mrb[0].mxu0 %v833
        %v869 = vpop.f32.mrb[0].mxu0
        %v870 = vadd.f32 %v830, %v869
        %v871 = vpop.f32.mrb[0].mxu0
        %v872 = vpop.f32.mrb[0].mxu0
        %v873 = vpop.f32.mrb[0].mxu0
        %874 = vdwg.mxu0
        %v875 = vtanh.pop %v870
        %s876 = sshra.s32 %s24, 7
        %s877 = sand.u32 %s24, 127
        %s878 = sadd.s32 %s876, %s23
        %s879 = smul.u32 %s878, 128
        %s880 = sshra.s32 %s24, 7
        %s881 = sand.u32 %s24, 127
        %s882 = sadd.s32 %s879, %s881
        %s883 = sld [smem:[#allocation4 + %s882]]
        %v884 = vld [vmem:[#allocation2] sm:$0x1]
        %v885 = vstv %s883
        %v886 = vmul.f32 %v885, %v875
        %v887 = vadd.f32 %v884, %v886
        %vm888 = vcmask 253952
        %889 = vst.msk [vmem:[#allocation2] sm:$0x1] %vm888, %v887
        %p890 = scmp.eq.s32.totalorder %s24, 2
        // Predicated region
        $region57: #{lit_aug_predictor_crossenc.1} parent=47 // pred_check
          %p891 = pneg %p890
        $region58: #{lit_aug_predictor_crossenc.1} parent=47 // pred_check_branch
          %893 = sbr.rel (%p891) target = $region60
        $region59: #{lit_aug_predictor_crossenc.1} parent=47 // pred_region
          %v894 = vld [vmem:[#allocation2] sm:$0x1]
          %v895 = vpack.c.bf16 %v894, %v894
          %v896 = vld [vmem:[%s5] sm:$0xf]
          %v897 = vld [vmem:[%s5 + $0x4] sm:$0xf]
          %v898 = vld [vmem:[%s5 + $0x8] sm:$0xf]
          %v899 = vld [vmem:[%s5 + $0xc] sm:$0xf]
          %v904 = vunpack.c.l.b16 %v896
          %v905 = vunpack.c.l.b16 %v897
          %v906 = vunpack.c.l.b16 %v898
          %v907 = vunpack.c.l.b16 %v899
          %v908 = vpack.c.b16 %v905, %v904
          %v909 = vpack.c.b16 %v907, %v906
          %v913 = vsel %vm355, %v895, 0
          %915 = vmatprep.subr.bf16.mxu0 0
          %916 = vmatpush1.bf16.msra.mxu0 %v908
          %917 = vmatprep.subr.bf16.mxu0 0
          %918 = vmatpush1.bf16.msra.mxu0 %v909
          %919 = vmatprep.subr.bf16.mxu0 0
          %920 = vmatpush1.bf16.msra.mxu0 0
          %921 = vmatprep.subr.bf16.mxu0 0
          %922 = vmatpush1.bf16.msra.mxu0 0
          %923 = vmatprep.subr.bf16.mxu0 0
          %924 = vmatpush1.bf16.msra.mxu0 0
          %925 = vmatprep.subr.bf16.mxu0 0
          %926 = vmatpush1.bf16.msra.mxu0 0
          %927 = vmatprep.subr.bf16.mxu0 0
          %928 = vmatpush1.bf16.msra.mxu0 0
          %929 = vmatprep.subr.bf16.mxu0 0
          %930 = vmatpush1.bf16.msra.mxu0 0
          %931 = vmatprep.subr.bf16.mxu0 0
          %932 = vmatpush1.bf16.msra.mxu0 0
          %933 = vmatprep.subr.bf16.mxu0 0
          %934 = vmatpush1.bf16.msra.mxu0 0
          %935 = vmatprep.subr.bf16.mxu0 0
          %936 = vmatpush1.bf16.msra.mxu0 0
          %937 = vmatprep.subr.bf16.mxu0 0
          %938 = vmatpush1.bf16.msra.mxu0 0
          %939 = vmatprep.subr.bf16.mxu0 0
          %940 = vmatpush1.bf16.msra.mxu0 0
          %941 = vmatprep.subr.bf16.mxu0 0
          %942 = vmatpush1.bf16.msra.mxu0 0
          %943 = vmatprep.subr.bf16.mxu0 0
          %944 = vmatpush1.bf16.msra.mxu0 0
          %945 = vmatprep.subr.bf16.mxu0 0
          %946 = vmatpush1.bf16.msra.mxu0 0
          %947 = vmatprep.mubr.bf16.mxu0 0
          %948 = vmatmul.mubr.bf16.gmra.mrb[0].mxu0 %v913
          %v949 = vpop.f32.mrb[0].mxu0
          %v950 = vadd.f32 %v353, %v949
          %v951 = vpop.f32.mrb[0].mxu0
          %v952 = vpop.f32.mrb[0].mxu0
          %v953 = vpop.f32.mrb[0].mxu0
          %954 = vdwg.mxu0
          %v955 = vlaneseq
          %v956 = vshrl.u32 %v955, 7
          %vm957 = vcmp.eq.s32.totalorder %v956, 0
          %v958 = vlaneseq
          %v959 = vshrl.u32 %v958, 7
          %v960 = vsub.s32 0, %v959
          %v961 = vrot.slane %v950, %v960
          %v962 = vsel %vm957, %v961, 0.0
          %963 = vst [vmem:[%s341] sm:$0xff] %v962
        $region60: #{lit_aug_predictor_crossenc.1} parent=47 // pred_fallthru
          _
        %p964 = scmp.lt.s32.totalorder %s23, 1
        %s965 = scalar_select %p964, %s23, 1
        %s966 = smul.addr %s965, 8
        %s967 = scalar_lea.vmem %s7, %s966
        // Predicated region
        $region61: #{lit_aug_predictor_crossenc.1} parent=47 // pred_check
          %p968 = pneg %p210
        $region62: #{lit_aug_predictor_crossenc.1} parent=47 // pred_check_branch
          %970 = sbr.rel (%p968) target = $region64
        $region63: #{lit_aug_predictor_crossenc.1} parent=47 // pred_region
          _
        $region64: #{lit_aug_predictor_crossenc.1} parent=47 // pred_fallthru
          _
      $region48: #{lit_aug_predictor_crossenc.1} parent=5 // pred_fallthru
        _
      %p971 = scmp.le.s32.totalorder 2, %s14
      // Predicated region
      $region65: #{lit_aug_predictor_crossenc.1} parent=5 // pred_check
        %p972 = pneg %p971
      $region66: #{lit_aug_predictor_crossenc.1} parent=5 // pred_check_branch
        %974 = sbr.rel (%p972) target = $region68
      $region67: #{lit_aug_predictor_crossenc.1} parent=5 // pred_region
        %s975 = ssub.s32 %s14, 2
        // Predicated region
        $region69: #{lit_aug_predictor_crossenc.1} parent=67 // pred_check
          %p976 = pneg %p216
        $region70: #{lit_aug_predictor_crossenc.1} parent=67 // pred_check_branch
          %978 = sbr.rel (%p976) target = $region72
        $region71: #{lit_aug_predictor_crossenc.1} parent=67 // pred_region
          %p979 = scmp.lt.s32.totalorder %s25, 1
          %s980 = scalar_select %p979, %s25, 1
          %s981 = smul.addr %s980, 8
          %s982 = scalar_lea.vmem %s7, %s981
        $region72: #{lit_aug_predictor_crossenc.1} parent=67 // pred_fallthru
          _
      $region68: #{lit_aug_predictor_crossenc.1} parent=5 // pred_fallthru
        _
    $region6: #{lit_aug_predictor_crossenc.1} parent=1 // loop_footer
      %s18 = sadd.s32 1, %s14
    $region7: #{lit_aug_predictor_crossenc.1} parent=1 // loop_footer_branch
      %13 = sbr.rel target = $region3
    $region8: #{lit_aug_predictor_crossenc.1} parent=1 // loop_exit
      _
    %983 = vsyncpa [#allocation5], 1
    %s984 = scalar_lea.sflag [#allocation5], 1
    %985 = vsyncpa %s984, 1

</llo_original>
